<compile_context>
chip_gen: v7x
topology: tpu7x:2x2x1
jax: 0.10.0
libtpu: 0.0.40
codegen_flags: <defaults>
</compile_context>

<pallas_src>
import functools

import jax
import jax.numpy as jnp
from jax import lax
from jax.experimental import pallas as pl
from jax.experimental.pallas import tpu as pltpu


def _layernorm(x, gamma, beta, eps=1e-5):
    mu = jnp.mean(x, axis=-1, keepdims=True)
    xc = x - mu
    var = jnp.mean(xc * xc, axis=-1, keepdims=True)
    return xc * lax.rsqrt(var + eps) * gamma + beta


def transformer_block_kernel(
    v_ref, k_ref, q_ref, mask_ref,
    wq_ref, wk_ref, wv_ref, wu_ref, bu_ref,
    w1_ref, b1_ref, w2_ref, b2_ref,
    g1_ref, be1_ref, g2_ref, be2_ref,
    out_ref,
    attn_scratch,                      # VMEM (NB*L, E) f32 attention output rows
    *, num_heads: int, embed_size: int, seq_len: int, batch_tile: int,
):
    E, H, L, NB = embed_size, num_heads, seq_len, batch_tile
    scale = 1.0 / (E ** 0.5)

    q_f32 = q_ref[...]                                    # (NB*L, E), f32 residual
    # Fold the 1/sqrt(E) softmax scale into q once (linear => equivalent).
    q_bf = (q_f32 * jnp.float32(scale)).astype(jnp.bfloat16)
    k_bf = k_ref[...].astype(jnp.bfloat16)
    v_bf = v_ref[...].astype(jnp.bfloat16)

    # Fat fused QKV projections over all NB*L rows at once: (NB*L, E) @ (E, H*E).
    wq = wq_ref[...].astype(jnp.bfloat16)
    wk = wk_ref[...].astype(jnp.bfloat16)
    wv = wv_ref[...].astype(jnp.bfloat16)
    qp = jnp.dot(q_bf, wq, preferred_element_type=jnp.float32)   # (NB*L, H*E)
    kp = jnp.dot(k_bf, wk, preferred_element_type=jnp.float32)
    vp = jnp.dot(v_bf, wv, preferred_element_type=jnp.float32)

    # Additive mask bias, built once per batch tile with compare+select
    # (matches masked_fill(mask == 0, -1e20) for any mask dtype/values).
    mask_f = mask_ref[...].astype(jnp.float32)                   # (NB, L, L)
    mask_bias = jnp.where(mask_f == 0.0, jnp.float32(-1e20), jnp.float32(0.0))

    # Hoist per-head row slices of the unify weight (sublane-aligned slices).
    wu_heads = [wu_ref[h * E:(h + 1) * E, :].astype(jnp.bfloat16) for h in range(H)]

    # Per (batch element, head) attention; each head folded straight into the
    # unified output (no (L, H*E) slab -> no 32-lane-wide masked stores).
    for nb in range(NB):                                   # static unroll (NB small)
        r0 = nb * L
        bias_nb = mask_bias[nb]                            # (L, L)
        acc = jnp.zeros((L, E), jnp.float32)
        for h in range(H):                                 # static unroll over heads
            c0 = h * E
            qh = qp[r0:r0 + L, c0:c0 + E].astype(jnp.bfloat16)   # (L, E)
            kh = kp[r0:r0 + L, c0:c0 + E].astype(jnp.bfloat16)   # (L, E)
            vh = vp[r0:r0 + L, c0:c0 + E].astype(jnp.bfloat16)   # (L, E)

            # qh @ kh^T without an explicit transpose (contract the last dims).
            s = lax.dot_general(qh, kh, (((1,), (1,)), ((), ())),
                                preferred_element_type=jnp.float32)      # (L, L)
            s = s + bias_nb
            s = s - jnp.max(s, axis=-1, keepdims=True)
            p = jnp.exp(s)
            # approx reciprocal: rows sum to ~1 (fine for inference tolerance).
            att = p * pl.reciprocal(jnp.sum(p, axis=-1, keepdims=True), approx=True)

            oh = jnp.dot(att.astype(jnp.bfloat16), vh,
                         preferred_element_type=jnp.float32)             # (L, E)
            acc = acc + jnp.dot(oh.astype(jnp.bfloat16), wu_heads[h],
                                preferred_element_type=jnp.float32)      # (L, E)
        attn_scratch[r0:r0 + L, :] = acc                   # aligned full-row store

    # Unify bias + residual + LayerNorm 1 (dropout == identity, eval mode).
    attn_out = attn_scratch[...] + bu_ref[...]                           # (NB*L, E)
    x = _layernorm(attn_out + q_f32, g1_ref[...], be1_ref[...])

    # Feed-forward: Linear -> ReLU -> Linear (bf16 MXU operands, f32 accumulation).
    h1 = jnp.maximum(
        jnp.dot(x.astype(jnp.bfloat16), w1_ref[...].astype(jnp.bfloat16),
                preferred_element_type=jnp.float32) + b1_ref[...], 0.0)  # (NB*L, F)
    ff = (jnp.dot(h1.astype(jnp.bfloat16), w2_ref[...].astype(jnp.bfloat16),
                  preferred_element_type=jnp.float32) + b2_ref[...])     # (NB*L, E)

    # Residual + LayerNorm 2; reshape only splits the leading (row) dim.
    y = _layernorm(ff + x, g2_ref[...], be2_ref[...])                    # (NB*L, E)
    out_ref[...] = y.reshape(NB, L, E)


def _pick_batch_tile(N, L, target_rows=256):
    """Batch elements fused per grid step so the MXU M dim sees ~target_rows
    rows (256 suits the v6e/v7x 256x256 MXU and is a 128-multiple for v5e).
    Must divide N."""
    nb = max(1, min(N, max(1, target_rows // max(L, 1))))
    while N % nb:
        nb -= 1
    return nb


def _replicated_spec(arr):
    """Whole-array block with constant index_map, single-buffered (constant
    index => double-buffering would only waste VMEM)."""
    nd = arr.ndim
    return pl.BlockSpec(arr.shape, lambda i, _nd=nd: (0,) * _nd,
                        pipeline_mode=pl.Buffered(1))


def prepare_params(params):
    """One-time (outside the hot path) bf16 cast of the matmul weights.
    Biases / LayerNorm params stay f32 (added to f32 accumulators)."""
    out = dict(params)
    for name in ("wq", "wk", "wv", "wu", "w1", "w2"):
        out[name] = params[name].astype(jnp.bfloat16)
    return out


def transformer_block(value, key, query, mask, params):
    """value/key/query: (N, L, E) f32; mask: (N, 1, L, L), 0 = blocked (int8
    recommended).  params: prepare_params(make_params(...))."""
    N, L, E = query.shape
    H = params["wq"].shape[1] // E

    NB = _pick_batch_tile(N, L)
    if (NB * L) % 8 != 0:
        NB = N   # keep the (NB*L, E) block's second-minor dim legal

    # Row-flatten activations in the wrapper (free layout plumbing) so the
    # kernel's projection / FFN matmuls see a fat (NB*L, E) operand directly.
    v2 = value.reshape(N * L, E)
    k2 = key.reshape(N * L, E)
    q2 = query.reshape(N * L, E)
    m3 = mask.reshape(N, L, L)

    weight_args = [
        params["wq"], params["wk"], params["wv"], params["wu"], params["bu"],
        params["w1"], params["b1"], params["w2"], params["b2"],
        params["g1"], params["be1"], params["g2"], params["be2"],
    ]

    row_spec = pl.BlockSpec((NB * L, E), lambda i: (i, 0))
    in_specs = [row_spec, row_spec, row_spec,
                pl.BlockSpec((NB, L, L), lambda i: (i, 0, 0))]
    in_specs += [_replicated_spec(w) for w in weight_args]

    kernel = functools.partial(
        transformer_block_kernel,
        num_heads=H, embed_size=E, seq_len=L, batch_tile=NB)

    return pl.pallas_call(
        kernel,
        out_shape=jax.ShapeDtypeStruct((N, L, E), jnp.float32),
        grid=(N // NB,),
        in_specs=in_specs,
        out_specs=pl.BlockSpec((NB, L, E), lambda i: (i, 0, 0)),
        scratch_shapes=[pltpu.VMEM((NB * L, E), jnp.float32)],
        compiler_params=pltpu.CompilerParams(
            dimension_semantics=("parallel",),
            # Explicit budget: below v7x's 64 MiB physical VMEM, above the
            # v5e/v6e default scoped limits.
            vmem_limit_bytes=48 * 1024 * 1024),
    )(v2, k2, q2, m3, *weight_args)


def transformer_block_reference(value, key, query, mask, p):
    """Pure-JAX f32 replica of the PyTorch forward for validation."""
    N, L, E = query.shape
    H = p["wq"].shape[1] // E
    qs = (query @ p["wq"]).reshape(N, L, H, E)
    ks = (key @ p["wk"]).reshape(N, L, H, E)
    vs = (value @ p["wv"]).reshape(N, L, H, E)
    dot = jnp.einsum("nqhd,nkhd->nhqk", qs, ks)
    dot = jnp.where(mask == 0, -1e20, dot)
    att = jax.nn.softmax(dot / (E ** 0.5), axis=3)
    out = jnp.einsum("nhql,nlhd->nqhd", att, vs).reshape(N, L, H * E)
    attn = out @ p["wu"] + p["bu"]
    x = _layernorm(attn + query, p["g1"], p["be1"])
    ff = jnp.maximum(x @ p["w1"] + p["b1"], 0.0) @ p["w2"] + p["b2"]
    return _layernorm(ff + x, p["g2"], p["be2"])


def make_params(key, embed_size, num_heads, forward_exp):
    E, H, F = embed_size, num_heads, forward_exp * embed_size
    ks = jax.random.split(key, 8)
    scale = 0.05
    return {
        # projection weights stored as (in_features, out_features)
        "wq": scale * jax.random.normal(ks[0], (E, E * H), jnp.float32),
        "wk": scale * jax.random.normal(ks[1], (E, E * H), jnp.float32),
        "wv": scale * jax.random.normal(ks[2], (E, E * H), jnp.float32),
        "wu": scale * jax.random.normal(ks[3], (E * H, E), jnp.float32),
        "bu": scale * jax.random.normal(ks[4], (1, E), jnp.float32),
        "w1": scale * jax.random.normal(ks[5], (E, F), jnp.float32),
        "b1": scale * jax.random.normal(ks[6], (1, F), jnp.float32),
        "w2": scale * jax.random.normal(ks[7], (F, E), jnp.float32),
        "b2": jnp.zeros((1, E), jnp.float32),
        # LayerNorm params (PyTorch default init: gamma=1, beta=0)
        "g1": jnp.ones((1, E), jnp.float32),
        "be1": jnp.zeros((1, E), jnp.float32),
        "g2": jnp.ones((1, E), jnp.float32),
        "be2": jnp.zeros((1, E), jnp.float32),
    }


if __name__ == "__main__":
    N, L, E, H, forward_exp = 2, 8, 32, 4, 2

    root = jax.random.PRNGKey(0)
    k_v, k_k, k_q, k_m, k_p = jax.random.split(root, 5)

    value = jax.random.normal(k_v, (N, L, E), jnp.float32)
    key_in = jax.random.normal(k_k, (N, L, E), jnp.float32)
    query = jax.random.normal(k_q, (N, L, E), jnp.float32)
    # Mask broadcastable over heads: (N, 1, Lq, Lk); 1 = attend, 0 = blocked.
    # int8 keeps its DMA traffic at 1/4 of an f32 mask.
    mask = (jax.random.uniform(k_m, (N, 1, L, L)) > 0.2).astype(jnp.int8)

    params = make_params(k_p, E, H, forward_exp)
    prepared = prepare_params(params)     # one-time bf16 cast, outside the hot path

    out = transformer_block(value, key_in, query, mask, prepared)
    out = jax.block_until_ready(out)

    ref = transformer_block_reference(value, key_in, query, mask, params)
    assert out.shape == (N, L, E)
    # bf16 MXU operands + approx reciprocal => relaxed tolerance vs f32 reference.
    assert jnp.allclose(out, ref, atol=2e-2, rtol=2e-2), "mismatch vs reference"

    print("KERNEL_OK")
</pallas_src>

<mosaic_0001>
module attributes {stable_mosaic.version = 11 : i64} {
  func.func @transformer_block_kernel(%arg0: i32, %arg1: memref<16x32xf32, #tpu.memory_space<vmem>>, %arg2: memref<16x32xf32, #tpu.memory_space<vmem>>, %arg3: memref<16x32xf32, #tpu.memory_space<vmem>>, %arg4: memref<2x8x8xi8, #tpu.memory_space<vmem>>, %arg5: memref<32x128xbf16, #tpu.memory_space<vmem>>, %arg6: memref<32x128xbf16, #tpu.memory_space<vmem>>, %arg7: memref<32x128xbf16, #tpu.memory_space<vmem>>, %arg8: memref<128x32xbf16, #tpu.memory_space<vmem>>, %arg9: memref<1x32xf32, #tpu.memory_space<vmem>>, %arg10: memref<32x64xbf16, #tpu.memory_space<vmem>>, %arg11: memref<1x64xf32, #tpu.memory_space<vmem>>, %arg12: memref<64x32xbf16, #tpu.memory_space<vmem>>, %arg13: memref<1x32xf32, #tpu.memory_space<vmem>>, %arg14: memref<1x32xf32, #tpu.memory_space<vmem>>, %arg15: memref<1x32xf32, #tpu.memory_space<vmem>>, %arg16: memref<1x32xf32, #tpu.memory_space<vmem>>, %arg17: memref<1x32xf32, #tpu.memory_space<vmem>>, %arg18: memref<2x8x32xf32, #tpu.memory_space<vmem>>, %arg19: memref<16x32xf32, #tpu.memory_space<vmem>>) attributes {dimension_semantics = [#tpu.dimension_semantics<parallel>], iteration_bounds = array<i64: 1>, scalar_prefetch = 0 : i64, scratch_operands = 1 : i64, tpu.core_type = #tpu.core_type<tc>, window_params = [{transform_indices = @transform_0, window_bounds = array<i64: 16, 32>}, {transform_indices = @transform_1, window_bounds = array<i64: 16, 32>}, {transform_indices = @transform_2, window_bounds = array<i64: 16, 32>}, {transform_indices = @transform_3, window_bounds = array<i64: 2, 8, 8>}, {pipeline_mode = #tpu.pipeline_mode<synchronous>, transform_indices = @transform_4, window_bounds = array<i64: 32, 128>}, {pipeline_mode = #tpu.pipeline_mode<synchronous>, transform_indices = @transform_5, window_bounds = array<i64: 32, 128>}, {pipeline_mode = #tpu.pipeline_mode<synchronous>, transform_indices = @transform_6, window_bounds = array<i64: 32, 128>}, {pipeline_mode = #tpu.pipeline_mode<synchronous>, transform_indices = @transform_7, window_bounds = array<i64: 128, 32>}, {pipeline_mode = #tpu.pipeline_mode<synchronous>, transform_indices = @transform_8, window_bounds = array<i64: 1, 32>}, {pipeline_mode = #tpu.pipeline_mode<synchronous>, transform_indices = @transform_9, window_bounds = array<i64: 32, 64>}, {pipeline_mode = #tpu.pipeline_mode<synchronous>, transform_indices = @transform_10, window_bounds = array<i64: 1, 64>}, {pipeline_mode = #tpu.pipeline_mode<synchronous>, transform_indices = @transform_11, window_bounds = array<i64: 64, 32>}, {pipeline_mode = #tpu.pipeline_mode<synchronous>, transform_indices = @transform_12, window_bounds = array<i64: 1, 32>}, {pipeline_mode = #tpu.pipeline_mode<synchronous>, transform_indices = @transform_13, window_bounds = array<i64: 1, 32>}, {pipeline_mode = #tpu.pipeline_mode<synchronous>, transform_indices = @transform_14, window_bounds = array<i64: 1, 32>}, {pipeline_mode = #tpu.pipeline_mode<synchronous>, transform_indices = @transform_15, window_bounds = array<i64: 1, 32>}, {pipeline_mode = #tpu.pipeline_mode<synchronous>, transform_indices = @transform_16, window_bounds = array<i64: 1, 32>}, {transform_indices = @transform_17, window_bounds = array<i64: 2, 8, 32>}]} {
    %c0 = arith.constant 0 : index
    %c0_0 = arith.constant 0 : index
    %0 = vector.load %arg3[%c0, %c0_0] : memref<16x32xf32, #tpu.memory_space<vmem>>, vector<16x32xf32>
    %cst = arith.constant 0.176776692 : f32
    %1 = vector.broadcast %cst : f32 to vector<16x32xf32>
    %2 = arith.mulf %0, %1 : vector<16x32xf32>
    %3 = arith.truncf %2 : vector<16x32xf32> to vector<16x32xbf16>
    %c0_1 = arith.constant 0 : index
    %c0_2 = arith.constant 0 : index
    %4 = vector.load %arg2[%c0_1, %c0_2] : memref<16x32xf32, #tpu.memory_space<vmem>>, vector<16x32xf32>
    %5 = arith.truncf %4 : vector<16x32xf32> to vector<16x32xbf16>
    %c0_3 = arith.constant 0 : index
    %c0_4 = arith.constant 0 : index
    %6 = vector.load %arg1[%c0_3, %c0_4] : memref<16x32xf32, #tpu.memory_space<vmem>>, vector<16x32xf32>
    %7 = arith.truncf %6 : vector<16x32xf32> to vector<16x32xbf16>
    %c0_5 = arith.constant 0 : index
    %c0_6 = arith.constant 0 : index
    %8 = vector.load %arg5[%c0_5, %c0_6] : memref<32x128xbf16, #tpu.memory_space<vmem>>, vector<32x128xbf16>
    %c0_7 = arith.constant 0 : index
    %c0_8 = arith.constant 0 : index
    %9 = vector.load %arg6[%c0_7, %c0_8] : memref<32x128xbf16, #tpu.memory_space<vmem>>, vector<32x128xbf16>
    %c0_9 = arith.constant 0 : index
    %c0_10 = arith.constant 0 : index
    %10 = vector.load %arg7[%c0_9, %c0_10] : memref<32x128xbf16, #tpu.memory_space<vmem>>, vector<32x128xbf16>
    %cst_11 = arith.constant dense<0.000000e+00> : vector<16x128xf32>
    %11 = tpu.matmul %3, %8, %cst_11 {dimension_numbers = #tpu.dot_dimension_numbers<[1], [0], [0], [1], [0, 0, 1, 1], [], []>} : vector<16x32xbf16>, vector<32x128xbf16>, vector<16x128xf32> -> vector<16x128xf32>
    %cst_12 = arith.constant dense<0.000000e+00> : vector<16x128xf32>
    %12 = tpu.matmul %5, %9, %cst_12 {dimension_numbers = #tpu.dot_dimension_numbers<[1], [0], [0], [1], [0, 0, 1, 1], [], []>} : vector<16x32xbf16>, vector<32x128xbf16>, vector<16x128xf32> -> vector<16x128xf32>
    %cst_13 = arith.constant dense<0.000000e+00> : vector<16x128xf32>
    %13 = tpu.matmul %7, %10, %cst_13 {dimension_numbers = #tpu.dot_dimension_numbers<[1], [0], [0], [1], [0, 0, 1, 1], [], []>} : vector<16x32xbf16>, vector<32x128xbf16>, vector<16x128xf32> -> vector<16x128xf32>
    %c0_14 = arith.constant 0 : index
    %c0_15 = arith.constant 0 : index
    %c0_16 = arith.constant 0 : index
    %14 = vector.load %arg4[%c0_14, %c0_15, %c0_16] : memref<2x8x8xi8, #tpu.memory_space<vmem>>, vector<2x8x8xi8>
    %15 = arith.sitofp %14 : vector<2x8x8xi8> to vector<2x8x8xf32>
    %cst_17 = arith.constant 0.000000e+00 : f32
    %16 = vector.broadcast %cst_17 : f32 to vector<2x8x8xf32>
    %17 = arith.cmpf oeq, %15, %16 : vector<2x8x8xf32>
    %cst_18 = arith.constant -1.000000e+20 : f32
    %cst_19 = arith.constant 0.000000e+00 : f32
    %18 = vector.broadcast %cst_18 : f32 to vector<2x8x8xf32>
    %19 = vector.broadcast %cst_19 : f32 to vector<2x8x8xf32>
    %20 = arith.select %17, %18, %19 : vector<2x8x8xi1>, vector<2x8x8xf32>
    %c0_20 = arith.constant 0 : index
    %c0_21 = arith.constant 0 : index
    %21 = vector.load %arg8[%c0_20, %c0_21] : memref<128x32xbf16, #tpu.memory_space<vmem>>, vector<32x32xbf16>
    %c32 = arith.constant 32 : index
    %c0_22 = arith.constant 0 : index
    %22 = vector.load %arg8[%c32, %c0_22] : memref<128x32xbf16, #tpu.memory_space<vmem>>, vector<32x32xbf16>
    %c64 = arith.constant 64 : index
    %c0_23 = arith.constant 0 : index
    %23 = vector.load %arg8[%c64, %c0_23] : memref<128x32xbf16, #tpu.memory_space<vmem>>, vector<32x32xbf16>
    %c96 = arith.constant 96 : index
    %c0_24 = arith.constant 0 : index
    %24 = vector.load %arg8[%c96, %c0_24] : memref<128x32xbf16, #tpu.memory_space<vmem>>, vector<32x32xbf16>
    %25 = vector.extract_strided_slice %20 {offsets = [0, 0, 0], sizes = [1, 8, 8], strides = [1, 1, 1]} : vector<2x8x8xf32> to vector<1x8x8xf32>
    %26 = vector.shape_cast %25 : vector<1x8x8xf32> to vector<8x8xf32>
    %cst_25 = arith.constant 0.000000e+00 : f32
    %27 = vector.broadcast %cst_25 : f32 to vector<8x32xf32>
    %28 = vector.extract_strided_slice %11 {offsets = [0, 0], sizes = [8, 32], strides = [1, 1]} : vector<16x128xf32> to vector<8x32xf32>
    %29 = arith.truncf %28 : vector<8x32xf32> to vector<8x32xbf16>
    %30 = vector.extract_strided_slice %12 {offsets = [0, 0], sizes = [8, 32], strides = [1, 1]} : vector<16x128xf32> to vector<8x32xf32>
    %31 = arith.truncf %30 : vector<8x32xf32> to vector<8x32xbf16>
    %32 = vector.extract_strided_slice %13 {offsets = [0, 0], sizes = [8, 32], strides = [1, 1]} : vector<16x128xf32> to vector<8x32xf32>
    %33 = arith.truncf %32 : vector<8x32xf32> to vector<8x32xbf16>
    %cst_26 = arith.constant dense<0.000000e+00> : vector<8x8xf32>
    %34 = tpu.matmul %29, %31, %cst_26 {dimension_numbers = #tpu.dot_dimension_numbers<[1], [1], [0], [0], [0, 0, 1, 0], [], []>} : vector<8x32xbf16>, vector<8x32xbf16>, vector<8x8xf32> -> vector<8x8xf32>
    %35 = arith.addf %34, %26 : vector<8x8xf32>
    %cst_27 = arith.constant dense<0xFF800000> : vector<8xf32>
    %36 = vector.multi_reduction <maximumf>, %35, %cst_27 [1] : vector<8x8xf32> to vector<8xf32>
    %37 = vector.shape_cast %36 : vector<8xf32> to vector<8x1xf32>
    %38 = vector.broadcast %37 : vector<8x1xf32> to vector<8x8xf32>
    %39 = arith.subf %35, %38 : vector<8x8xf32>
    %40 = math.exp %39 : vector<8x8xf32>
    %cst_28 = arith.constant dense<0.000000e+00> : vector<8xf32>
    %41 = vector.multi_reduction <add>, %40, %cst_28 [1] : vector<8x8xf32> to vector<8xf32>
    %42 = vector.shape_cast %41 : vector<8xf32> to vector<8x1xf32>
    %43 = tpu.reciprocal %42 {approx = true} : vector<8x1xf32> -> vector<8x1xf32>
    %44 = vector.broadcast %43 : vector<8x1xf32> to vector<8x8xf32>
    %45 = arith.mulf %40, %44 : vector<8x8xf32>
    %46 = arith.truncf %45 : vector<8x8xf32> to vector<8x8xbf16>
    %cst_29 = arith.constant dense<0.000000e+00> : vector<8x32xf32>
    %47 = tpu.matmul %46, %33, %cst_29 {dimension_numbers = #tpu.dot_dimension_numbers<[1], [0], [0], [1], [0, 0, 1, 1], [], []>} : vector<8x8xbf16>, vector<8x32xbf16>, vector<8x32xf32> -> vector<8x32xf32>
    %48 = arith.truncf %47 : vector<8x32xf32> to vector<8x32xbf16>
    %cst_30 = arith.constant dense<0.000000e+00> : vector<8x32xf32>
    %49 = tpu.matmul %48, %21, %cst_30 {dimension_numbers = #tpu.dot_dimension_numbers<[1], [0], [0], [1], [0, 0, 1, 1], [], []>} : vector<8x32xbf16>, vector<32x32xbf16>, vector<8x32xf32> -> vector<8x32xf32>
    %50 = arith.addf %27, %49 : vector<8x32xf32>
    %51 = vector.extract_strided_slice %11 {offsets = [0, 32], sizes = [8, 32], strides = [1, 1]} : vector<16x128xf32> to vector<8x32xf32>
    %52 = arith.truncf %51 : vector<8x32xf32> to vector<8x32xbf16>
    %53 = vector.extract_strided_slice %12 {offsets = [0, 32], sizes = [8, 32], strides = [1, 1]} : vector<16x128xf32> to vector<8x32xf32>
    %54 = arith.truncf %53 : vector<8x32xf32> to vector<8x32xbf16>
    %55 = vector.extract_strided_slice %13 {offsets = [0, 32], sizes = [8, 32], strides = [1, 1]} : vector<16x128xf32> to vector<8x32xf32>
    %56 = arith.truncf %55 : vector<8x32xf32> to vector<8x32xbf16>
    %cst_31 = arith.constant dense<0.000000e+00> : vector<8x8xf32>
    %57 = tpu.matmul %52, %54, %cst_31 {dimension_numbers = #tpu.dot_dimension_numbers<[1], [1], [0], [0], [0, 0, 1, 0], [], []>} : vector<8x32xbf16>, vector<8x32xbf16>, vector<8x8xf32> -> vector<8x8xf32>
    %58 = arith.addf %57, %26 : vector<8x8xf32>
    %cst_32 = arith.constant dense<0xFF800000> : vector<8xf32>
    %59 = vector.multi_reduction <maximumf>, %58, %cst_32 [1] : vector<8x8xf32> to vector<8xf32>
    %60 = vector.shape_cast %59 : vector<8xf32> to vector<8x1xf32>
    %61 = vector.broadcast %60 : vector<8x1xf32> to vector<8x8xf32>
    %62 = arith.subf %58, %61 : vector<8x8xf32>
    %63 = math.exp %62 : vector<8x8xf32>
    %cst_33 = arith.constant dense<0.000000e+00> : vector<8xf32>
    %64 = vector.multi_reduction <add>, %63, %cst_33 [1] : vector<8x8xf32> to vector<8xf32>
    %65 = vector.shape_cast %64 : vector<8xf32> to vector<8x1xf32>
    %66 = tpu.reciprocal %65 {approx = true} : vector<8x1xf32> -> vector<8x1xf32>
    %67 = vector.broadcast %66 : vector<8x1xf32> to vector<8x8xf32>
    %68 = arith.mulf %63, %67 : vector<8x8xf32>
    %69 = arith.truncf %68 : vector<8x8xf32> to vector<8x8xbf16>
    %cst_34 = arith.constant dense<0.000000e+00> : vector<8x32xf32>
    %70 = tpu.matmul %69, %56, %cst_34 {dimension_numbers = #tpu.dot_dimension_numbers<[1], [0], [0], [1], [0, 0, 1, 1], [], []>} : vector<8x8xbf16>, vector<8x32xbf16>, vector<8x32xf32> -> vector<8x32xf32>
    %71 = arith.truncf %70 : vector<8x32xf32> to vector<8x32xbf16>
    %cst_35 = arith.constant dense<0.000000e+00> : vector<8x32xf32>
    %72 = tpu.matmul %71, %22, %cst_35 {dimension_numbers = #tpu.dot_dimension_numbers<[1], [0], [0], [1], [0, 0, 1, 1], [], []>} : vector<8x32xbf16>, vector<32x32xbf16>, vector<8x32xf32> -> vector<8x32xf32>
    %73 = arith.addf %50, %72 : vector<8x32xf32>
    %74 = vector.extract_strided_slice %11 {offsets = [0, 64], sizes = [8, 32], strides = [1, 1]} : vector<16x128xf32> to vector<8x32xf32>
    %75 = arith.truncf %74 : vector<8x32xf32> to vector<8x32xbf16>
    %76 = vector.extract_strided_slice %12 {offsets = [0, 64], sizes = [8, 32], strides = [1, 1]} : vector<16x128xf32> to vector<8x32xf32>
    %77 = arith.truncf %76 : vector<8x32xf32> to vector<8x32xbf16>
    %78 = vector.extract_strided_slice %13 {offsets = [0, 64], sizes = [8, 32], strides = [1, 1]} : vector<16x128xf32> to vector<8x32xf32>
    %79 = arith.truncf %78 : vector<8x32xf32> to vector<8x32xbf16>
    %cst_36 = arith.constant dense<0.000000e+00> : vector<8x8xf32>
    %80 = tpu.matmul %75, %77, %cst_36 {dimension_numbers = #tpu.dot_dimension_numbers<[1], [1], [0], [0], [0, 0, 1, 0], [], []>} : vector<8x32xbf16>, vector<8x32xbf16>, vector<8x8xf32> -> vector<8x8xf32>
    %81 = arith.addf %80, %26 : vector<8x8xf32>
    %cst_37 = arith.constant dense<0xFF800000> : vector<8xf32>
    %82 = vector.multi_reduction <maximumf>, %81, %cst_37 [1] : vector<8x8xf32> to vector<8xf32>
    %83 = vector.shape_cast %82 : vector<8xf32> to vector<8x1xf32>
    %84 = vector.broadcast %83 : vector<8x1xf32> to vector<8x8xf32>
    %85 = arith.subf %81, %84 : vector<8x8xf32>
    %86 = math.exp %85 : vector<8x8xf32>
    %cst_38 = arith.constant dense<0.000000e+00> : vector<8xf32>
    %87 = vector.multi_reduction <add>, %86, %cst_38 [1] : vector<8x8xf32> to vector<8xf32>
    %88 = vector.shape_cast %87 : vector<8xf32> to vector<8x1xf32>
    %89 = tpu.reciprocal %88 {approx = true} : vector<8x1xf32> -> vector<8x1xf32>
    %90 = vector.broadcast %89 : vector<8x1xf32> to vector<8x8xf32>
    %91 = arith.mulf %86, %90 : vector<8x8xf32>
    %92 = arith.truncf %91 : vector<8x8xf32> to vector<8x8xbf16>
    %cst_39 = arith.constant dense<0.000000e+00> : vector<8x32xf32>
    %93 = tpu.matmul %92, %79, %cst_39 {dimension_numbers = #tpu.dot_dimension_numbers<[1], [0], [0], [1], [0, 0, 1, 1], [], []>} : vector<8x8xbf16>, vector<8x32xbf16>, vector<8x32xf32> -> vector<8x32xf32>
    %94 = arith.truncf %93 : vector<8x32xf32> to vector<8x32xbf16>
    %cst_40 = arith.constant dense<0.000000e+00> : vector<8x32xf32>
    %95 = tpu.matmul %94, %23, %cst_40 {dimension_numbers = #tpu.dot_dimension_numbers<[1], [0], [0], [1], [0, 0, 1, 1], [], []>} : vector<8x32xbf16>, vector<32x32xbf16>, vector<8x32xf32> -> vector<8x32xf32>
    %96 = arith.addf %73, %95 : vector<8x32xf32>
    %97 = vector.extract_strided_slice %11 {offsets = [0, 96], sizes = [8, 32], strides = [1, 1]} : vector<16x128xf32> to vector<8x32xf32>
    %98 = arith.truncf %97 : vector<8x32xf32> to vector<8x32xbf16>
    %99 = vector.extract_strided_slice %12 {offsets = [0, 96], sizes = [8, 32], strides = [1, 1]} : vector<16x128xf32> to vector<8x32xf32>
    %100 = arith.truncf %99 : vector<8x32xf32> to vector<8x32xbf16>
    %101 = vector.extract_strided_slice %13 {offsets = [0, 96], sizes = [8, 32], strides = [1, 1]} : vector<16x128xf32> to vector<8x32xf32>
    %102 = arith.truncf %101 : vector<8x32xf32> to vector<8x32xbf16>
    %cst_41 = arith.constant dense<0.000000e+00> : vector<8x8xf32>
    %103 = tpu.matmul %98, %100, %cst_41 {dimension_numbers = #tpu.dot_dimension_numbers<[1], [1], [0], [0], [0, 0, 1, 0], [], []>} : vector<8x32xbf16>, vector<8x32xbf16>, vector<8x8xf32> -> vector<8x8xf32>
    %104 = arith.addf %103, %26 : vector<8x8xf32>
    %cst_42 = arith.constant dense<0xFF800000> : vector<8xf32>
    %105 = vector.multi_reduction <maximumf>, %104, %cst_42 [1] : vector<8x8xf32> to vector<8xf32>
    %106 = vector.shape_cast %105 : vector<8xf32> to vector<8x1xf32>
    %107 = vector.broadcast %106 : vector<8x1xf32> to vector<8x8xf32>
    %108 = arith.subf %104, %107 : vector<8x8xf32>
    %109 = math.exp %108 : vector<8x8xf32>
    %cst_43 = arith.constant dense<0.000000e+00> : vector<8xf32>
    %110 = vector.multi_reduction <add>, %109, %cst_43 [1] : vector<8x8xf32> to vector<8xf32>
    %111 = vector.shape_cast %110 : vector<8xf32> to vector<8x1xf32>
    %112 = tpu.reciprocal %111 {approx = true} : vector<8x1xf32> -> vector<8x1xf32>
    %113 = vector.broadcast %112 : vector<8x1xf32> to vector<8x8xf32>
    %114 = arith.mulf %109, %113 : vector<8x8xf32>
    %115 = arith.truncf %114 : vector<8x8xf32> to vector<8x8xbf16>
    %cst_44 = arith.constant dense<0.000000e+00> : vector<8x32xf32>
    %116 = tpu.matmul %115, %102, %cst_44 {dimension_numbers = #tpu.dot_dimension_numbers<[1], [0], [0], [1], [0, 0, 1, 1], [], []>} : vector<8x8xbf16>, vector<8x32xbf16>, vector<8x32xf32> -> vector<8x32xf32>
    %117 = arith.truncf %116 : vector<8x32xf32> to vector<8x32xbf16>
    %cst_45 = arith.constant dense<0.000000e+00> : vector<8x32xf32>
    %118 = tpu.matmul %117, %24, %cst_45 {dimension_numbers = #tpu.dot_dimension_numbers<[1], [0], [0], [1], [0, 0, 1, 1], [], []>} : vector<8x32xbf16>, vector<32x32xbf16>, vector<8x32xf32> -> vector<8x32xf32>
    %119 = arith.addf %96, %118 : vector<8x32xf32>
    %c0_46 = arith.constant 0 : index
    %c0_47 = arith.constant 0 : index
    %120 = vector.load %arg19[%c0_46, %c0_47] : memref<16x32xf32, #tpu.memory_space<vmem>>, vector<8x32xf32>
    tpu.vector_store %arg19[%c0_46, %c0_47], %119 {strides = array<i32>} : memref<16x32xf32, #tpu.memory_space<vmem>>, vector<8x32xf32>,
    %121 = vector.extract_strided_slice %20 {offsets = [1, 0, 0], sizes = [1, 8, 8], strides = [1, 1, 1]} : vector<2x8x8xf32> to vector<1x8x8xf32>
    %122 = vector.shape_cast %121 : vector<1x8x8xf32> to vector<8x8xf32>
    %cst_48 = arith.constant 0.000000e+00 : f32
    %123 = vector.broadcast %cst_48 : f32 to vector<8x32xf32>
    %124 = vector.extract_strided_slice %11 {offsets = [8, 0], sizes = [8, 32], strides = [1, 1]} : vector<16x128xf32> to vector<8x32xf32>
    %125 = arith.truncf %124 : vector<8x32xf32> to vector<8x32xbf16>
    %126 = vector.extract_strided_slice %12 {offsets = [8, 0], sizes = [8, 32], strides = [1, 1]} : vector<16x128xf32> to vector<8x32xf32>
    %127 = arith.truncf %126 : vector<8x32xf32> to vector<8x32xbf16>
    %128 = vector.extract_strided_slice %13 {offsets = [8, 0], sizes = [8, 32], strides = [1, 1]} : vector<16x128xf32> to vector<8x32xf32>
    %129 = arith.truncf %128 : vector<8x32xf32> to vector<8x32xbf16>
    %cst_49 = arith.constant dense<0.000000e+00> : vector<8x8xf32>
    %130 = tpu.matmul %125, %127, %cst_49 {dimension_numbers = #tpu.dot_dimension_numbers<[1], [1], [0], [0], [0, 0, 1, 0], [], []>} : vector<8x32xbf16>, vector<8x32xbf16>, vector<8x8xf32> -> vector<8x8xf32>
    %131 = arith.addf %130, %122 : vector<8x8xf32>
    %cst_50 = arith.constant dense<0xFF800000> : vector<8xf32>
    %132 = vector.multi_reduction <maximumf>, %131, %cst_50 [1] : vector<8x8xf32> to vector<8xf32>
    %133 = vector.shape_cast %132 : vector<8xf32> to vector<8x1xf32>
    %134 = vector.broadcast %133 : vector<8x1xf32> to vector<8x8xf32>
    %135 = arith.subf %131, %134 : vector<8x8xf32>
    %136 = math.exp %135 : vector<8x8xf32>
    %cst_51 = arith.constant dense<0.000000e+00> : vector<8xf32>
    %137 = vector.multi_reduction <add>, %136, %cst_51 [1] : vector<8x8xf32> to vector<8xf32>
    %138 = vector.shape_cast %137 : vector<8xf32> to vector<8x1xf32>
    %139 = tpu.reciprocal %138 {approx = true} : vector<8x1xf32> -> vector<8x1xf32>
    %140 = vector.broadcast %139 : vector<8x1xf32> to vector<8x8xf32>
    %141 = arith.mulf %136, %140 : vector<8x8xf32>
    %142 = arith.truncf %141 : vector<8x8xf32> to vector<8x8xbf16>
    %cst_52 = arith.constant dense<0.000000e+00> : vector<8x32xf32>
    %143 = tpu.matmul %142, %129, %cst_52 {dimension_numbers = #tpu.dot_dimension_numbers<[1], [0], [0], [1], [0, 0, 1, 1], [], []>} : vector<8x8xbf16>, vector<8x32xbf16>, vector<8x32xf32> -> vector<8x32xf32>
    %144 = arith.truncf %143 : vector<8x32xf32> to vector<8x32xbf16>
    %cst_53 = arith.constant dense<0.000000e+00> : vector<8x32xf32>
    %145 = tpu.matmul %144, %21, %cst_53 {dimension_numbers = #tpu.dot_dimension_numbers<[1], [0], [0], [1], [0, 0, 1, 1], [], []>} : vector<8x32xbf16>, vector<32x32xbf16>, vector<8x32xf32> -> vector<8x32xf32>
    %146 = arith.addf %123, %145 : vector<8x32xf32>
    %147 = vector.extract_strided_slice %11 {offsets = [8, 32], sizes = [8, 32], strides = [1, 1]} : vector<16x128xf32> to vector<8x32xf32>
    %148 = arith.truncf %147 : vector<8x32xf32> to vector<8x32xbf16>
    %149 = vector.extract_strided_slice %12 {offsets = [8, 32], sizes = [8, 32], strides = [1, 1]} : vector<16x128xf32> to vector<8x32xf32>
    %150 = arith.truncf %149 : vector<8x32xf32> to vector<8x32xbf16>
    %151 = vector.extract_strided_slice %13 {offsets = [8, 32], sizes = [8, 32], strides = [1, 1]} : vector<16x128xf32> to vector<8x32xf32>
    %152 = arith.truncf %151 : vector<8x32xf32> to vector<8x32xbf16>
    %cst_54 = arith.constant dense<0.000000e+00> : vector<8x8xf32>
    %153 = tpu.matmul %148, %150, %cst_54 {dimension_numbers = #tpu.dot_dimension_numbers<[1], [1], [0], [0], [0, 0, 1, 0], [], []>} : vector<8x32xbf16>, vector<8x32xbf16>, vector<8x8xf32> -> vector<8x8xf32>
    %154 = arith.addf %153, %122 : vector<8x8xf32>
    %cst_55 = arith.constant dense<0xFF800000> : vector<8xf32>
    %155 = vector.multi_reduction <maximumf>, %154, %cst_55 [1] : vector<8x8xf32> to vector<8xf32>
    %156 = vector.shape_cast %155 : vector<8xf32> to vector<8x1xf32>
    %157 = vector.broadcast %156 : vector<8x1xf32> to vector<8x8xf32>
    %158 = arith.subf %154, %157 : vector<8x8xf32>
    %159 = math.exp %158 : vector<8x8xf32>
    %cst_56 = arith.constant dense<0.000000e+00> : vector<8xf32>
    %160 = vector.multi_reduction <add>, %159, %cst_56 [1] : vector<8x8xf32> to vector<8xf32>
    %161 = vector.shape_cast %160 : vector<8xf32> to vector<8x1xf32>
    %162 = tpu.reciprocal %161 {approx = true} : vector<8x1xf32> -> vector<8x1xf32>
    %163 = vector.broadcast %162 : vector<8x1xf32> to vector<8x8xf32>
    %164 = arith.mulf %159, %163 : vector<8x8xf32>
    %165 = arith.truncf %164 : vector<8x8xf32> to vector<8x8xbf16>
    %cst_57 = arith.constant dense<0.000000e+00> : vector<8x32xf32>
    %166 = tpu.matmul %165, %152, %cst_57 {dimension_numbers = #tpu.dot_dimension_numbers<[1], [0], [0], [1], [0, 0, 1, 1], [], []>} : vector<8x8xbf16>, vector<8x32xbf16>, vector<8x32xf32> -> vector<8x32xf32>
    %167 = arith.truncf %166 : vector<8x32xf32> to vector<8x32xbf16>
    %cst_58 = arith.constant dense<0.000000e+00> : vector<8x32xf32>
    %168 = tpu.matmul %167, %22, %cst_58 {dimension_numbers = #tpu.dot_dimension_numbers<[1], [0], [0], [1], [0, 0, 1, 1], [], []>} : vector<8x32xbf16>, vector<32x32xbf16>, vector<8x32xf32> -> vector<8x32xf32>
    %169 = arith.addf %146, %168 : vector<8x32xf32>
    %170 = vector.extract_strided_slice %11 {offsets = [8, 64], sizes = [8, 32], strides = [1, 1]} : vector<16x128xf32> to vector<8x32xf32>
    %171 = arith.truncf %170 : vector<8x32xf32> to vector<8x32xbf16>
    %172 = vector.extract_strided_slice %12 {offsets = [8, 64], sizes = [8, 32], strides = [1, 1]} : vector<16x128xf32> to vector<8x32xf32>
    %173 = arith.truncf %172 : vector<8x32xf32> to vector<8x32xbf16>
    %174 = vector.extract_strided_slice %13 {offsets = [8, 64], sizes = [8, 32], strides = [1, 1]} : vector<16x128xf32> to vector<8x32xf32>
    %175 = arith.truncf %174 : vector<8x32xf32> to vector<8x32xbf16>
    %cst_59 = arith.constant dense<0.000000e+00> : vector<8x8xf32>
    %176 = tpu.matmul %171, %173, %cst_59 {dimension_numbers = #tpu.dot_dimension_numbers<[1], [1], [0], [0], [0, 0, 1, 0], [], []>} : vector<8x32xbf16>, vector<8x32xbf16>, vector<8x8xf32> -> vector<8x8xf32>
    %177 = arith.addf %176, %122 : vector<8x8xf32>
    %cst_60 = arith.constant dense<0xFF800000> : vector<8xf32>
    %178 = vector.multi_reduction <maximumf>, %177, %cst_60 [1] : vector<8x8xf32> to vector<8xf32>
    %179 = vector.shape_cast %178 : vector<8xf32> to vector<8x1xf32>
    %180 = vector.broadcast %179 : vector<8x1xf32> to vector<8x8xf32>
    %181 = arith.subf %177, %180 : vector<8x8xf32>
    %182 = math.exp %181 : vector<8x8xf32>
    %cst_61 = arith.constant dense<0.000000e+00> : vector<8xf32>
    %183 = vector.multi_reduction <add>, %182, %cst_61 [1] : vector<8x8xf32> to vector<8xf32>
    %184 = vector.shape_cast %183 : vector<8xf32> to vector<8x1xf32>
    %185 = tpu.reciprocal %184 {approx = true} : vector<8x1xf32> -> vector<8x1xf32>
    %186 = vector.broadcast %185 : vector<8x1xf32> to vector<8x8xf32>
    %187 = arith.mulf %182, %186 : vector<8x8xf32>
    %188 = arith.truncf %187 : vector<8x8xf32> to vector<8x8xbf16>
    %cst_62 = arith.constant dense<0.000000e+00> : vector<8x32xf32>
    %189 = tpu.matmul %188, %175, %cst_62 {dimension_numbers = #tpu.dot_dimension_numbers<[1], [0], [0], [1], [0, 0, 1, 1], [], []>} : vector<8x8xbf16>, vector<8x32xbf16>, vector<8x32xf32> -> vector<8x32xf32>
    %190 = arith.truncf %189 : vector<8x32xf32> to vector<8x32xbf16>
    %cst_63 = arith.constant dense<0.000000e+00> : vector<8x32xf32>
    %191 = tpu.matmul %190, %23, %cst_63 {dimension_numbers = #tpu.dot_dimension_numbers<[1], [0], [0], [1], [0, 0, 1, 1], [], []>} : vector<8x32xbf16>, vector<32x32xbf16>, vector<8x32xf32> -> vector<8x32xf32>
    %192 = arith.addf %169, %191 : vector<8x32xf32>
    %193 = vector.extract_strided_slice %11 {offsets = [8, 96], sizes = [8, 32], strides = [1, 1]} : vector<16x128xf32> to vector<8x32xf32>
    %194 = arith.truncf %193 : vector<8x32xf32> to vector<8x32xbf16>
    %195 = vector.extract_strided_slice %12 {offsets = [8, 96], sizes = [8, 32], strides = [1, 1]} : vector<16x128xf32> to vector<8x32xf32>
    %196 = arith.truncf %195 : vector<8x32xf32> to vector<8x32xbf16>
    %197 = vector.extract_strided_slice %13 {offsets = [8, 96], sizes = [8, 32], strides = [1, 1]} : vector<16x128xf32> to vector<8x32xf32>
    %198 = arith.truncf %197 : vector<8x32xf32> to vector<8x32xbf16>
    %cst_64 = arith.constant dense<0.000000e+00> : vector<8x8xf32>
    %199 = tpu.matmul %194, %196, %cst_64 {dimension_numbers = #tpu.dot_dimension_numbers<[1], [1], [0], [0], [0, 0, 1, 0], [], []>} : vector<8x32xbf16>, vector<8x32xbf16>, vector<8x8xf32> -> vector<8x8xf32>
    %200 = arith.addf %199, %122 : vector<8x8xf32>
    %cst_65 = arith.constant dense<0xFF800000> : vector<8xf32>
    %201 = vector.multi_reduction <maximumf>, %200, %cst_65 [1] : vector<8x8xf32> to vector<8xf32>
    %202 = vector.shape_cast %201 : vector<8xf32> to vector<8x1xf32>
    %203 = vector.broadcast %202 : vector<8x1xf32> to vector<8x8xf32>
    %204 = arith.subf %200, %203 : vector<8x8xf32>
    %205 = math.exp %204 : vector<8x8xf32>
    %cst_66 = arith.constant dense<0.000000e+00> : vector<8xf32>
    %206 = vector.multi_reduction <add>, %205, %cst_66 [1] : vector<8x8xf32> to vector<8xf32>
    %207 = vector.shape_cast %206 : vector<8xf32> to vector<8x1xf32>
    %208 = tpu.reciprocal %207 {approx = true} : vector<8x1xf32> -> vector<8x1xf32>
    %209 = vector.broadcast %208 : vector<8x1xf32> to vector<8x8xf32>
    %210 = arith.mulf %205, %209 : vector<8x8xf32>
    %211 = arith.truncf %210 : vector<8x8xf32> to vector<8x8xbf16>
    %cst_67 = arith.constant dense<0.000000e+00> : vector<8x32xf32>
    %212 = tpu.matmul %211, %198, %cst_67 {dimension_numbers = #tpu.dot_dimension_numbers<[1], [0], [0], [1], [0, 0, 1, 1], [], []>} : vector<8x8xbf16>, vector<8x32xbf16>, vector<8x32xf32> -> vector<8x32xf32>
    %213 = arith.truncf %212 : vector<8x32xf32> to vector<8x32xbf16>
    %cst_68 = arith.constant dense<0.000000e+00> : vector<8x32xf32>
    %214 = tpu.matmul %213, %24, %cst_68 {dimension_numbers = #tpu.dot_dimension_numbers<[1], [0], [0], [1], [0, 0, 1, 1], [], []>} : vector<8x32xbf16>, vector<32x32xbf16>, vector<8x32xf32> -> vector<8x32xf32>
    %215 = arith.addf %192, %214 : vector<8x32xf32>
    %c8 = arith.constant 8 : index
    %c0_69 = arith.constant 0 : index
    %216 = vector.load %arg19[%c8, %c0_69] : memref<16x32xf32, #tpu.memory_space<vmem>>, vector<8x32xf32>
    tpu.vector_store %arg19[%c8, %c0_69], %215 {strides = array<i32>} : memref<16x32xf32, #tpu.memory_space<vmem>>, vector<8x32xf32>,
    %c0_70 = arith.constant 0 : index
    %c0_71 = arith.constant 0 : index
    %217 = vector.load %arg19[%c0_70, %c0_71] : memref<16x32xf32, #tpu.memory_space<vmem>>, vector<16x32xf32>
    %c0_72 = arith.constant 0 : index
    %c0_73 = arith.constant 0 : index
    %218 = vector.load %arg9[%c0_72, %c0_73] : memref<1x32xf32, #tpu.memory_space<vmem>>, vector<1x32xf32>
    %219 = vector.broadcast %218 : vector<1x32xf32> to vector<16x32xf32>
    %220 = arith.addf %217, %219 : vector<16x32xf32>
    %221 = arith.addf %220, %0 : vector<16x32xf32>
    %c0_74 = arith.constant 0 : index
    %c0_75 = arith.constant 0 : index
    %222 = vector.load %arg14[%c0_74, %c0_75] : memref<1x32xf32, #tpu.memory_space<vmem>>, vector<1x32xf32>
    %c0_76 = arith.constant 0 : index
    %c0_77 = arith.constant 0 : index
    %223 = vector.load %arg15[%c0_76, %c0_77] : memref<1x32xf32, #tpu.memory_space<vmem>>, vector<1x32xf32>
    %cst_78 = arith.constant dense<0.000000e+00> : vector<16xf32>
    %224 = vector.multi_reduction <add>, %221, %cst_78 [1] : vector<16x32xf32> to vector<16xf32>
    %225 = vector.shape_cast %224 : vector<16xf32> to vector<16x1xf32>
    %cst_79 = arith.constant 3.200000e+01 : f32
    %226 = vector.broadcast %cst_79 : f32 to vector<16x1xf32>
    %227 = arith.divf %225, %226 : vector<16x1xf32>
    %228 = vector.broadcast %227 : vector<16x1xf32> to vector<16x32xf32>
    %229 = arith.subf %221, %228 : vector<16x32xf32>
    %230 = arith.mulf %229, %229 : vector<16x32xf32>
    %cst_80 = arith.constant dense<0.000000e+00> : vector<16xf32>
    %231 = vector.multi_reduction <add>, %230, %cst_80 [1] : vector<16x32xf32> to vector<16xf32>
    %232 = vector.shape_cast %231 : vector<16xf32> to vector<16x1xf32>
    %cst_81 = arith.constant 3.200000e+01 : f32
    %233 = vector.broadcast %cst_81 : f32 to vector<16x1xf32>
    %234 = arith.divf %232, %233 : vector<16x1xf32>
    %cst_82 = arith.constant 9.99999974E-6 : f32
    %235 = vector.broadcast %cst_82 : f32 to vector<16x1xf32>
    %236 = arith.addf %234, %235 : vector<16x1xf32>
    %237 = math.rsqrt %236 : vector<16x1xf32>
    %238 = vector.broadcast %237 : vector<16x1xf32> to vector<16x32xf32>
    %239 = arith.mulf %229, %238 : vector<16x32xf32>
    %240 = vector.broadcast %222 : vector<1x32xf32> to vector<16x32xf32>
    %241 = arith.mulf %239, %240 : vector<16x32xf32>
    %242 = vector.broadcast %223 : vector<1x32xf32> to vector<16x32xf32>
    %243 = arith.addf %241, %242 : vector<16x32xf32>
    %244 = arith.truncf %243 : vector<16x32xf32> to vector<16x32xbf16>
    %c0_83 = arith.constant 0 : index
    %c0_84 = arith.constant 0 : index
    %245 = vector.load %arg10[%c0_83, %c0_84] : memref<32x64xbf16, #tpu.memory_space<vmem>>, vector<32x64xbf16>
    %cst_85 = arith.constant dense<0.000000e+00> : vector<16x64xf32>
    %246 = tpu.matmul %244, %245, %cst_85 {dimension_numbers = #tpu.dot_dimension_numbers<[1], [0], [0], [1], [0, 0, 1, 1], [], []>} : vector<16x32xbf16>, vector<32x64xbf16>, vector<16x64xf32> -> vector<16x64xf32>
    %c0_86 = arith.constant 0 : index
    %c0_87 = arith.constant 0 : index
    %247 = vector.load %arg11[%c0_86, %c0_87] : memref<1x64xf32, #tpu.memory_space<vmem>>, vector<1x64xf32>
    %248 = vector.broadcast %247 : vector<1x64xf32> to vector<16x64xf32>
    %249 = arith.addf %246, %248 : vector<16x64xf32>
    %cst_88 = arith.constant 0.000000e+00 : f32
    %250 = vector.broadcast %cst_88 : f32 to vector<16x64xf32>
    %251 = arith.maximumf %249, %250 : vector<16x64xf32>
    %252 = arith.truncf %251 : vector<16x64xf32> to vector<16x64xbf16>
    %c0_89 = arith.constant 0 : index
    %c0_90 = arith.constant 0 : index
    %253 = vector.load %arg12[%c0_89, %c0_90] : memref<64x32xbf16, #tpu.memory_space<vmem>>, vector<64x32xbf16>
    %cst_91 = arith.constant dense<0.000000e+00> : vector<16x32xf32>
    %254 = tpu.matmul %252, %253, %cst_91 {dimension_numbers = #tpu.dot_dimension_numbers<[1], [0], [0], [1], [0, 0, 1, 1], [], []>} : vector<16x64xbf16>, vector<64x32xbf16>, vector<16x32xf32> -> vector<16x32xf32>
    %c0_92 = arith.constant 0 : index
    %c0_93 = arith.constant 0 : index
    %255 = vector.load %arg13[%c0_92, %c0_93] : memref<1x32xf32, #tpu.memory_space<vmem>>, vector<1x32xf32>
    %256 = vector.broadcast %255 : vector<1x32xf32> to vector<16x32xf32>
    %257 = arith.addf %254, %256 : vector<16x32xf32>
    %258 = arith.addf %257, %243 : vector<16x32xf32>
    %c0_94 = arith.constant 0 : index
    %c0_95 = arith.constant 0 : index
    %259 = vector.load %arg16[%c0_94, %c0_95] : memref<1x32xf32, #tpu.memory_space<vmem>>, vector<1x32xf32>
    %c0_96 = arith.constant 0 : index
    %c0_97 = arith.constant 0 : index
    %260 = vector.load %arg17[%c0_96, %c0_97] : memref<1x32xf32, #tpu.memory_space<vmem>>, vector<1x32xf32>
    %cst_98 = arith.constant dense<0.000000e+00> : vector<16xf32>
    %261 = vector.multi_reduction <add>, %258, %cst_98 [1] : vector<16x32xf32> to vector<16xf32>
    %262 = vector.shape_cast %261 : vector<16xf32> to vector<16x1xf32>
    %cst_99 = arith.constant 3.200000e+01 : f32
    %263 = vector.broadcast %cst_99 : f32 to vector<16x1xf32>
    %264 = arith.divf %262, %263 : vector<16x1xf32>
    %265 = vector.broadcast %264 : vector<16x1xf32> to vector<16x32xf32>
    %266 = arith.subf %258, %265 : vector<16x32xf32>
    %267 = arith.mulf %266, %266 : vector<16x32xf32>
    %cst_100 = arith.constant dense<0.000000e+00> : vector<16xf32>
    %268 = vector.multi_reduction <add>, %267, %cst_100 [1] : vector<16x32xf32> to vector<16xf32>
    %269 = vector.shape_cast %268 : vector<16xf32> to vector<16x1xf32>
    %cst_101 = arith.constant 3.200000e+01 : f32
    %270 = vector.broadcast %cst_101 : f32 to vector<16x1xf32>
    %271 = arith.divf %269, %270 : vector<16x1xf32>
    %cst_102 = arith.constant 9.99999974E-6 : f32
    %272 = vector.broadcast %cst_102 : f32 to vector<16x1xf32>
    %273 = arith.addf %271, %272 : vector<16x1xf32>
    %274 = math.rsqrt %273 : vector<16x1xf32>
    %275 = vector.broadcast %274 : vector<16x1xf32> to vector<16x32xf32>
    %276 = arith.mulf %266, %275 : vector<16x32xf32>
    %277 = vector.broadcast %259 : vector<1x32xf32> to vector<16x32xf32>
    %278 = arith.mulf %276, %277 : vector<16x32xf32>
    %279 = vector.broadcast %260 : vector<1x32xf32> to vector<16x32xf32>
    %280 = arith.addf %278, %279 : vector<16x32xf32>
    %281 = vector.shape_cast %280 : vector<16x32xf32> to vector<2x8x32xf32>
    %c0_103 = arith.constant 0 : index
    %c0_104 = arith.constant 0 : index
    %c0_105 = arith.constant 0 : index
    %282 = vector.load %arg18[%c0_103, %c0_104, %c0_105] : memref<2x8x32xf32, #tpu.memory_space<vmem>>, vector<2x8x32xf32>
    tpu.vector_store %arg18[%c0_103, %c0_104, %c0_105], %281 {strides = array<i32>} : memref<2x8x32xf32, #tpu.memory_space<vmem>>, vector<2x8x32xf32>,
    return
  }
  func.func @transform_0(%arg0: i32) -> (i32, i32) {
    %c0_i32 = arith.constant 0 : i32
    %c0_i32_0 = arith.constant 0 : i32
    return %arg0, %c0_i32 : i32, i32
  }
  func.func @transform_1(%arg0: i32) -> (i32, i32) {
    %c0_i32 = arith.constant 0 : i32
    %c0_i32_0 = arith.constant 0 : i32
    return %arg0, %c0_i32 : i32, i32
  }
  func.func @transform_2(%arg0: i32) -> (i32, i32) {
    %c0_i32 = arith.constant 0 : i32
    %c0_i32_0 = arith.constant 0 : i32
    return %arg0, %c0_i32 : i32, i32
  }
  func.func @transform_3(%arg0: i32) -> (i32, i32, i32) {
    %c0_i32 = arith.constant 0 : i32
    %c0_i32_0 = arith.constant 0 : i32
    %c0_i32_1 = arith.constant 0 : i32
    return %arg0, %c0_i32, %c0_i32_0 : i32, i32, i32
  }
  func.func @transform_4(%arg0: i32) -> (i32, i32) {
    %c0_i32 = arith.constant 0 : i32
    %c0_i32_0 = arith.constant 0 : i32
    %c0_i32_1 = arith.constant 0 : i32
    return %c0_i32, %c0_i32_0 : i32, i32
  }
  func.func @transform_5(%arg0: i32) -> (i32, i32) {
    %c0_i32 = arith.constant 0 : i32
    %c0_i32_0 = arith.constant 0 : i32
    %c0_i32_1 = arith.constant 0 : i32
    return %c0_i32, %c0_i32_0 : i32, i32
  }
  func.func @transform_6(%arg0: i32) -> (i32, i32) {
    %c0_i32 = arith.constant 0 : i32
    %c0_i32_0 = arith.constant 0 : i32
    %c0_i32_1 = arith.constant 0 : i32
    return %c0_i32, %c0_i32_0 : i32, i32
  }
  func.func @transform_7(%arg0: i32) -> (i32, i32) {
    %c0_i32 = arith.constant 0 : i32
    %c0_i32_0 = arith.constant 0 : i32
    %c0_i32_1 = arith.constant 0 : i32
    return %c0_i32, %c0_i32_0 : i32, i32
  }
  func.func @transform_8(%arg0: i32) -> (i32, i32) {
    %c0_i32 = arith.constant 0 : i32
    %c0_i32_0 = arith.constant 0 : i32
    %c0_i32_1 = arith.constant 0 : i32
    return %c0_i32, %c0_i32_0 : i32, i32
  }
  func.func @transform_9(%arg0: i32) -> (i32, i32) {
    %c0_i32 = arith.constant 0 : i32
    %c0_i32_0 = arith.constant 0 : i32
    %c0_i32_1 = arith.constant 0 : i32
    return %c0_i32, %c0_i32_0 : i32, i32
  }
  func.func @transform_10(%arg0: i32) -> (i32, i32) {
    %c0_i32 = arith.constant 0 : i32
    %c0_i32_0 = arith.constant 0 : i32
    %c0_i32_1 = arith.constant 0 : i32
    return %c0_i32, %c0_i32_0 : i32, i32
  }
  func.func @transform_11(%arg0: i32) -> (i32, i32) {
    %c0_i32 = arith.constant 0 : i32
    %c0_i32_0 = arith.constant 0 : i32
    %c0_i32_1 = arith.constant 0 : i32
    return %c0_i32, %c0_i32_0 : i32, i32
  }
  func.func @transform_12(%arg0: i32) -> (i32, i32) {
    %c0_i32 = arith.constant 0 : i32
    %c0_i32_0 = arith.constant 0 : i32
    %c0_i32_1 = arith.constant 0 : i32
    return %c0_i32, %c0_i32_0 : i32, i32
  }
  func.func @transform_13(%arg0: i32) -> (i32, i32) {
    %c0_i32 = arith.constant 0 : i32
    %c0_i32_0 = arith.constant 0 : i32
    %c0_i32_1 = arith.constant 0 : i32
    return %c0_i32, %c0_i32_0 : i32, i32
  }
  func.func @transform_14(%arg0: i32) -> (i32, i32) {
    %c0_i32 = arith.constant 0 : i32
    %c0_i32_0 = arith.constant 0 : i32
    %c0_i32_1 = arith.constant 0 : i32
    return %c0_i32, %c0_i32_0 : i32, i32
  }
  func.func @transform_15(%arg0: i32) -> (i32, i32) {
    %c0_i32 = arith.constant 0 : i32
    %c0_i32_0 = arith.constant 0 : i32
    %c0_i32_1 = arith.constant 0 : i32
    return %c0_i32, %c0_i32_0 : i32, i32
  }
  func.func @transform_16(%arg0: i32) -> (i32, i32) {
    %c0_i32 = arith.constant 0 : i32
    %c0_i32_0 = arith.constant 0 : i32
    %c0_i32_1 = arith.constant 0 : i32
    return %c0_i32, %c0_i32_0 : i32, i32
  }
  func.func @transform_17(%arg0: i32) -> (i32, i32, i32) {
    %c0_i32 = arith.constant 0 : i32
    %c0_i32_0 = arith.constant 0 : i32
    %c0_i32_1 = arith.constant 0 : i32
    return %arg0, %c0_i32, %c0_i32_0 : i32, i32, i32
  }
}

</mosaic_0001>

<llo_original>
// kernel: tpu_custom_call.1
$region0: #{tpu_custom_call.1}
  #allocation0 [shape = 'u32[]', space=smem, size = 0x4, offset = 0x4, fixed_abs, tag = 'smem constant byte address 0x4 - core index']
  #allocation1 [shape = 'u32[144,128]{1,0:T(1,128)}', space=vmem, size = 0x12000, scoped, tag = 'internal scratch']
  #allocation2 [shape = 'f32[16,32]{1,0:T(8,128)}', space=vmem, size = 0x2000, scoped, tag = 'scratch operand']
  %s0 = inlined_call_operand.vmem [shape: f32[16,32], index: 0, kind: input, shape index: {}]
  %s1 = inlined_call_operand.vmem [shape: f32[16,32], index: 1, kind: input, shape index: {}]
  %s2 = inlined_call_operand.vmem [shape: f32[16,32], index: 2, kind: input, shape index: {}]
  %s3 = inlined_call_operand.vmem [shape: s8[2,8,8], index: 3, kind: input, shape index: {}]
  %s4 = inlined_call_operand.vmem [shape: bf16[32,128], index: 4, kind: input, shape index: {}]
  %s5 = inlined_call_operand.vmem [shape: bf16[32,128], index: 5, kind: input, shape index: {}]
  %s6 = inlined_call_operand.vmem [shape: bf16[32,128], index: 6, kind: input, shape index: {}]
  %s7 = inlined_call_operand.vmem [shape: bf16[128,32], index: 7, kind: input, shape index: {}]
  %s8 = inlined_call_operand.vmem [shape: f32[1,32], index: 8, kind: input, shape index: {}]
  %s9 = inlined_call_operand.vmem [shape: bf16[32,64], index: 9, kind: input, shape index: {}]
  %s10 = inlined_call_operand.vmem [shape: f32[1,64], index: 10, kind: input, shape index: {}]
  %s11 = inlined_call_operand.vmem [shape: bf16[64,32], index: 11, kind: input, shape index: {}]
  %s12 = inlined_call_operand.vmem [shape: f32[1,32], index: 12, kind: input, shape index: {}]
  %s13 = inlined_call_operand.vmem [shape: f32[1,32], index: 13, kind: input, shape index: {}]
  %s14 = inlined_call_operand.vmem [shape: f32[1,32], index: 14, kind: input, shape index: {}]
  %s15 = inlined_call_operand.vmem [shape: f32[1,32], index: 15, kind: input, shape index: {}]
  %s16 = inlined_call_operand.vmem [shape: f32[1,32], index: 16, kind: input, shape index: {}]
  %s17 = inlined_call_operand.hbm [shape: f32[2,8,32], index: 17, kind: output, shape index: {}]
  %s18 = sld [smem:[#allocation0]]
  $region78: #{tpu_custom_call.1} parent=0
    _
  %s20 = ssub.s32 1, %s18
  %s21 = scalar_select 0, %s20, %s18
  $region1: #{tpu_custom_call.1} parent=0
    #allocation3 [shape = 'u8[8192]{0}', space=vmem, size = 0x2000, scoped, tag = 'output window, operand 0, single buffered']
    #allocation4 [shape = 's32[1]{0}', space=sflag, size = 0x4, scoped, tag = 'scoped memory for tpu_custom_call.1']
    %22 = vsyncpa [#allocation4], 0
    // Predicated region
    $region2: #{tpu_custom_call.1} parent=1 // pred_check
      _
    $region3: #{tpu_custom_call.1} parent=1 // pred_check_branch
      %24 = sbr.rel (0) target = $region5
    $region4: #{tpu_custom_call.1} parent=1 // pred_region
      _
    $region5: #{tpu_custom_call.1} parent=1 // pred_fallthru
      _
    // Predicated region
    $region6: #{tpu_custom_call.1} parent=1 // pred_check
      _
    $region7: #{tpu_custom_call.1} parent=1 // pred_check_branch
      %26 = sbr.rel (0) target = $region9
    $region8: #{tpu_custom_call.1} parent=1 // pred_region
      _
    $region9: #{tpu_custom_call.1} parent=1 // pred_fallthru
      _
    // Predicated region
    $region10: #{tpu_custom_call.1} parent=1 // pred_check
      _
    $region11: #{tpu_custom_call.1} parent=1 // pred_check_branch
      %28 = sbr.rel (0) target = $region13
    $region12: #{tpu_custom_call.1} parent=1 // pred_region
      _
    $region13: #{tpu_custom_call.1} parent=1 // pred_fallthru
      _
    // Predicated region
    $region14: #{tpu_custom_call.1} parent=1 // pred_check
      _
    $region15: #{tpu_custom_call.1} parent=1 // pred_check_branch
      %30 = sbr.rel (0) target = $region17
    $region16: #{tpu_custom_call.1} parent=1 // pred_region
      _
    $region17: #{tpu_custom_call.1} parent=1 // pred_fallthru
      _
    // Predicated region
    $region18: #{tpu_custom_call.1} parent=1 // pred_check
      _
    $region19: #{tpu_custom_call.1} parent=1 // pred_check_branch
      %32 = sbr.rel (0) target = $region21
    $region20: #{tpu_custom_call.1} parent=1 // pred_region
      _
    $region21: #{tpu_custom_call.1} parent=1 // pred_fallthru
      _
    // Predicated region
    $region22: #{tpu_custom_call.1} parent=1 // pred_check
      _
    $region23: #{tpu_custom_call.1} parent=1 // pred_check_branch
      %34 = sbr.rel (0) target = $region25
    $region24: #{tpu_custom_call.1} parent=1 // pred_region
      _
    $region25: #{tpu_custom_call.1} parent=1 // pred_fallthru
      _
    // Predicated region
    $region26: #{tpu_custom_call.1} parent=1 // pred_check
      _
    $region27: #{tpu_custom_call.1} parent=1 // pred_check_branch
      %36 = sbr.rel (0) target = $region29
    $region28: #{tpu_custom_call.1} parent=1 // pred_region
      _
    $region29: #{tpu_custom_call.1} parent=1 // pred_fallthru
      _
    // Predicated region
    $region30: #{tpu_custom_call.1} parent=1 // pred_check
      _
    $region31: #{tpu_custom_call.1} parent=1 // pred_check_branch
      %38 = sbr.rel (0) target = $region33
    $region32: #{tpu_custom_call.1} parent=1 // pred_region
      _
    $region33: #{tpu_custom_call.1} parent=1 // pred_fallthru
      _
    // Predicated region
    $region34: #{tpu_custom_call.1} parent=1 // pred_check
      _
    $region35: #{tpu_custom_call.1} parent=1 // pred_check_branch
      %40 = sbr.rel (0) target = $region37
    $region36: #{tpu_custom_call.1} parent=1 // pred_region
      _
    $region37: #{tpu_custom_call.1} parent=1 // pred_fallthru
      _
    // Predicated region
    $region38: #{tpu_custom_call.1} parent=1 // pred_check
      _
    $region39: #{tpu_custom_call.1} parent=1 // pred_check_branch
      %42 = sbr.rel (0) target = $region41
    $region40: #{tpu_custom_call.1} parent=1 // pred_region
      _
    $region41: #{tpu_custom_call.1} parent=1 // pred_fallthru
      _
    // Predicated region
    $region42: #{tpu_custom_call.1} parent=1 // pred_check
      _
    $region43: #{tpu_custom_call.1} parent=1 // pred_check_branch
      %44 = sbr.rel (0) target = $region45
    $region44: #{tpu_custom_call.1} parent=1 // pred_region
      _
    $region45: #{tpu_custom_call.1} parent=1 // pred_fallthru
      _
    // Predicated region
    $region46: #{tpu_custom_call.1} parent=1 // pred_check
      _
    $region47: #{tpu_custom_call.1} parent=1 // pred_check_branch
      %46 = sbr.rel (0) target = $region49
    $region48: #{tpu_custom_call.1} parent=1 // pred_region
      _
    $region49: #{tpu_custom_call.1} parent=1 // pred_fallthru
      _
    // Predicated region
    $region50: #{tpu_custom_call.1} parent=1 // pred_check
      _
    $region51: #{tpu_custom_call.1} parent=1 // pred_check_branch
      %48 = sbr.rel (0) target = $region53
    $region52: #{tpu_custom_call.1} parent=1 // pred_region
      _
    $region53: #{tpu_custom_call.1} parent=1 // pred_fallthru
      _
    // Predicated region
    $region54: #{tpu_custom_call.1} parent=1 // pred_check
      _
    $region55: #{tpu_custom_call.1} parent=1 // pred_check_branch
      %50 = sbr.rel (0) target = $region57
    $region56: #{tpu_custom_call.1} parent=1 // pred_region
      _
    $region57: #{tpu_custom_call.1} parent=1 // pred_fallthru
      _
    // Predicated region
    $region58: #{tpu_custom_call.1} parent=1 // pred_check
      _
    $region59: #{tpu_custom_call.1} parent=1 // pred_check_branch
      %52 = sbr.rel (0) target = $region61
    $region60: #{tpu_custom_call.1} parent=1 // pred_region
      _
    $region61: #{tpu_custom_call.1} parent=1 // pred_fallthru
      _
    // Predicated region
    $region62: #{tpu_custom_call.1} parent=1 // pred_check
      _
    $region63: #{tpu_custom_call.1} parent=1 // pred_check_branch
      %54 = sbr.rel (0) target = $region65
    $region64: #{tpu_custom_call.1} parent=1 // pred_region
      _
    $region65: #{tpu_custom_call.1} parent=1 // pred_fallthru
      _
    // Predicated region
    $region66: #{tpu_custom_call.1} parent=1 // pred_check
      _
    $region67: #{tpu_custom_call.1} parent=1 // pred_check_branch
      %56 = sbr.rel (0) target = $region69
    $region68: #{tpu_custom_call.1} parent=1 // pred_region
      _
    $region69: #{tpu_custom_call.1} parent=1 // pred_fallthru
      _
    %v58 = vld [vmem:[%s2] sm:$0xff]
    %v59 = vld [vmem:[%s2 + $0x8] sm:$0xff]
    %v60 = vmul.f32 %v58, 0.17677669
    %v61 = vmul.f32 %v59, 0.17677669
    %v62 = vpack.c.bf16 %v61, %v60
    %v63 = vld [vmem:[%s1] sm:$0xff]
    %v64 = vld [vmem:[%s1 + $0x8] sm:$0xff]
    %v65 = vpack.c.bf16 %v64, %v63
    %v66 = vld [vmem:[%s0] sm:$0xff]
    %v67 = vld [vmem:[%s0 + $0x8] sm:$0xff]
    %v68 = vpack.c.bf16 %v67, %v66
    %v69 = vld [vmem:[%s4] sm:$0xf]
    %v70 = vld [vmem:[%s4 + $0x4] sm:$0xf]
    %v71 = vld [vmem:[%s4 + $0x8] sm:$0xf]
    %v72 = vld [vmem:[%s4 + $0xc] sm:$0xf]
    %v73 = vld [vmem:[%s5] sm:$0xf]
    %v74 = vld [vmem:[%s5 + $0x4] sm:$0xf]
    %v75 = vld [vmem:[%s5 + $0x8] sm:$0xf]
    %v76 = vld [vmem:[%s5 + $0xc] sm:$0xf]
    %v77 = vld [vmem:[%s6] sm:$0xf]
    %v78 = vld [vmem:[%s6 + $0x4] sm:$0xf]
    %v79 = vld [vmem:[%s6 + $0x8] sm:$0xf]
    %v80 = vld [vmem:[%s6 + $0xc] sm:$0xf]
    %v85 = vunpack.c.l.b16 %v69
    %v86 = vunpack.c.l.b16 %v70
    %v87 = vunpack.c.l.b16 %v71
    %v88 = vunpack.c.l.b16 %v72
    %v89 = vpack.c.b16 %v86, %v85
    %v90 = vpack.c.b16 %v88, %v87
    %vm93 = vcmask 261120
    %v95 = vsel %vm93, %v62, 0
    %97 = vmatprep.subr.bf16.mxu0 0
    %98 = vmatpush1.bf16.msra.mxu0 %v89
    %99 = vmatprep.subr.bf16.mxu0 0
    %100 = vmatpush1.bf16.msra.mxu0 %v90
    %101 = vmatprep.subr.bf16.mxu0 0
    %102 = vmatpush1.bf16.msra.mxu0 0
    %103 = vmatprep.subr.bf16.mxu0 0
    %104 = vmatpush1.bf16.msra.mxu0 0
    %105 = vmatprep.subr.bf16.mxu0 0
    %106 = vmatpush1.bf16.msra.mxu0 0
    %107 = vmatprep.subr.bf16.mxu0 0
    %108 = vmatpush1.bf16.msra.mxu0 0
    %109 = vmatprep.subr.bf16.mxu0 0
    %110 = vmatpush1.bf16.msra.mxu0 0
    %111 = vmatprep.subr.bf16.mxu0 0
    %112 = vmatpush1.bf16.msra.mxu0 0
    %113 = vmatprep.subr.bf16.mxu0 0
    %114 = vmatpush1.bf16.msra.mxu0 0
    %115 = vmatprep.subr.bf16.mxu0 0
    %116 = vmatpush1.bf16.msra.mxu0 0
    %117 = vmatprep.subr.bf16.mxu0 0
    %118 = vmatpush1.bf16.msra.mxu0 0
    %119 = vmatprep.subr.bf16.mxu0 0
    %120 = vmatpush1.bf16.msra.mxu0 0
    %121 = vmatprep.subr.bf16.mxu0 0
    %122 = vmatpush1.bf16.msra.mxu0 0
    %123 = vmatprep.subr.bf16.mxu0 0
    %124 = vmatpush1.bf16.msra.mxu0 0
    %125 = vmatprep.subr.bf16.mxu0 0
    %126 = vmatpush1.bf16.msra.mxu0 0
    %127 = vmatprep.subr.bf16.mxu0 0
    %128 = vmatpush1.bf16.msra.mxu0 0
    %129 = vmatprep.mubr.bf16.mxu0 0
    %130 = vmatmul.mubr.bf16.gmra.mrb[0].mxu0 %v95
    %v131 = vpop.f32.mrb[0].mxu0
    %v132 = vadd.f32 0.0, %v131
    %v133 = vpop.f32.mrb[0].mxu0
    %v134 = vpop.f32.mrb[0].mxu0
    %v135 = vadd.f32 0.0, %v134
    %v136 = vpop.f32.mrb[0].mxu0
    %137 = vdwg.mxu0
    %v142 = vunpack.c.l.b16 %v73
    %v143 = vunpack.c.l.b16 %v74
    %v144 = vunpack.c.l.b16 %v75
    %v145 = vunpack.c.l.b16 %v76
    %v146 = vpack.c.b16 %v143, %v142
    %v147 = vpack.c.b16 %v145, %v144
    %v151 = vsel %vm93, %v65, 0
    %153 = vmatprep.subr.bf16.mxu0 0
    %154 = vmatpush1.bf16.msra.mxu0 %v146
    %155 = vmatprep.subr.bf16.mxu0 0
    %156 = vmatpush1.bf16.msra.mxu0 %v147
    %157 = vmatprep.subr.bf16.mxu0 0
    %158 = vmatpush1.bf16.msra.mxu0 0
    %159 = vmatprep.subr.bf16.mxu0 0
    %160 = vmatpush1.bf16.msra.mxu0 0
    %161 = vmatprep.subr.bf16.mxu0 0
    %162 = vmatpush1.bf16.msra.mxu0 0
    %163 = vmatprep.subr.bf16.mxu0 0
    %164 = vmatpush1.bf16.msra.mxu0 0
    %165 = vmatprep.subr.bf16.mxu0 0
    %166 = vmatpush1.bf16.msra.mxu0 0
    %167 = vmatprep.subr.bf16.mxu0 0
    %168 = vmatpush1.bf16.msra.mxu0 0
    %169 = vmatprep.subr.bf16.mxu0 0
    %170 = vmatpush1.bf16.msra.mxu0 0
    %171 = vmatprep.subr.bf16.mxu0 0
    %172 = vmatpush1.bf16.msra.mxu0 0
    %173 = vmatprep.subr.bf16.mxu0 0
    %174 = vmatpush1.bf16.msra.mxu0 0
    %175 = vmatprep.subr.bf16.mxu0 0
    %176 = vmatpush1.bf16.msra.mxu0 0
    %177 = vmatprep.subr.bf16.mxu0 0
    %178 = vmatpush1.bf16.msra.mxu0 0
    %179 = vmatprep.subr.bf16.mxu0 0
    %180 = vmatpush1.bf16.msra.mxu0 0
    %181 = vmatprep.subr.bf16.mxu0 0
    %182 = vmatpush1.bf16.msra.mxu0 0
    %183 = vmatprep.subr.bf16.mxu0 0
    %184 = vmatpush1.bf16.msra.mxu0 0
    %185 = vmatprep.mubr.bf16.mxu0 0
    %186 = vmatmul.mubr.bf16.gmra.mrb[0].mxu0 %v151
    %v187 = vpop.f32.mrb[0].mxu0
    %v188 = vadd.f32 0.0, %v187
    %v189 = vpop.f32.mrb[0].mxu0
    %v190 = vpop.f32.mrb[0].mxu0
    %v191 = vadd.f32 0.0, %v190
    %v192 = vpop.f32.mrb[0].mxu0
    %193 = vdwg.mxu0
    %v198 = vunpack.c.l.b16 %v77
    %v199 = vunpack.c.l.b16 %v78
    %v200 = vunpack.c.l.b16 %v79
    %v201 = vunpack.c.l.b16 %v80
    %v202 = vpack.c.b16 %v199, %v198
    %v203 = vpack.c.b16 %v201, %v200
    %v207 = vsel %vm93, %v68, 0
    %209 = vmatprep.subr.bf16.mxu0 0
    %210 = vmatpush1.bf16.msra.mxu0 %v202
    %211 = vmatprep.subr.bf16.mxu0 0
    %212 = vmatpush1.bf16.msra.mxu0 %v203
    %213 = vmatprep.subr.bf16.mxu0 0
    %214 = vmatpush1.bf16.msra.mxu0 0
    %215 = vmatprep.subr.bf16.mxu0 0
    %216 = vmatpush1.bf16.msra.mxu0 0
    %217 = vmatprep.subr.bf16.mxu0 0
    %218 = vmatpush1.bf16.msra.mxu0 0
    %219 = vmatprep.subr.bf16.mxu0 0
    %220 = vmatpush1.bf16.msra.mxu0 0
    %221 = vmatprep.subr.bf16.mxu0 0
    %222 = vmatpush1.bf16.msra.mxu0 0
    %223 = vmatprep.subr.bf16.mxu0 0
    %224 = vmatpush1.bf16.msra.mxu0 0
    %225 = vmatprep.subr.bf16.mxu0 0
    %226 = vmatpush1.bf16.msra.mxu0 0
    %227 = vmatprep.subr.bf16.mxu0 0
    %228 = vmatpush1.bf16.msra.mxu0 0
    %229 = vmatprep.subr.bf16.mxu0 0
    %230 = vmatpush1.bf16.msra.mxu0 0
    %231 = vmatprep.subr.bf16.mxu0 0
    %232 = vmatpush1.bf16.msra.mxu0 0
    %233 = vmatprep.subr.bf16.mxu0 0
    %234 = vmatpush1.bf16.msra.mxu0 0
    %235 = vmatprep.subr.bf16.mxu0 0
    %236 = vmatpush1.bf16.msra.mxu0 0
    %237 = vmatprep.subr.bf16.mxu0 0
    %238 = vmatpush1.bf16.msra.mxu0 0
    %239 = vmatprep.subr.bf16.mxu0 0
    %240 = vmatpush1.bf16.msra.mxu0 0
    %241 = vmatprep.mubr.bf16.mxu0 0
    %242 = vmatmul.mubr.bf16.gmra.mrb[0].mxu0 %v207
    %v243 = vpop.f32.mrb[0].mxu0
    %v244 = vadd.f32 0.0, %v243
    %v245 = vpop.f32.mrb[0].mxu0
    %v246 = vpop.f32.mrb[0].mxu0
    %v247 = vadd.f32 0.0, %v246
    %v248 = vpop.f32.mrb[0].mxu0
    %249 = vdwg.mxu0
    %v250 = vld [vmem:[%s3] sm:$0x3]
    %v251 = vld [vmem:[%s3 + $0x2] sm:$0x3]
    %v252 = vunpack.c.0.s8 %v250
    %v253 = vunpack.c.0.s8 %v251
    %v254 = vcvt.s32.f32 %v252
    %v255 = vcvt.s32.f32 %v253
    %vm256 = vcmp.eq.f32.partialorder %v254, 0.0
    %vm257 = vcmp.eq.f32.partialorder %v255, 0.0
    %v258 = vsel %vm256, -1e+20, 0.0
    %v259 = vsel %vm257, -1e+20, 0.0
    %v260 = vld [vmem:[%s7] sm:$0xf]
    %v261 = vld [vmem:[%s7 + $0x4] sm:$0xf]
    %v262 = vld [vmem:[%s7 + $0x8] sm:$0xf]
    %v263 = vld [vmem:[%s7 + $0xc] sm:$0xf]
    %v264 = vld [vmem:[%s7 + $0x10] sm:$0xf]
    %v265 = vld [vmem:[%s7 + $0x14] sm:$0xf]
    %v266 = vld [vmem:[%s7 + $0x18] sm:$0xf]
    %v267 = vld [vmem:[%s7 + $0x1c] sm:$0xf]
    %v268 = vld [vmem:[%s7 + $0x20] sm:$0xf]
    %v269 = vld [vmem:[%s7 + $0x24] sm:$0xf]
    %v270 = vld [vmem:[%s7 + $0x28] sm:$0xf]
    %v271 = vld [vmem:[%s7 + $0x2c] sm:$0xf]
    %v272 = vld [vmem:[%s7 + $0x30] sm:$0xf]
    %v273 = vld [vmem:[%s7 + $0x34] sm:$0xf]
    %v274 = vld [vmem:[%s7 + $0x38] sm:$0xf]
    %v275 = vld [vmem:[%s7 + $0x3c] sm:$0xf]
    %v276 = vpack.c.bf16 %v132, %v132
    %v277 = vpack.c.bf16 %v188, %v188
    %v278 = vpack.c.bf16 %v244, %v244
    %v280 = vsel %vm93, %v276, 0
    %v283 = vsel %vm93, %v277, 0
    %285 = vmatprep.subr.bf16.mxu0 0
    %286 = vmatpush1.bf16.xpose.msra.mxu0 %v283
    %287 = vmatprep.subr.bf16.mxu0 0
    %288 = vmatpush1.bf16.xpose.msra.mxu0 0
    %289 = vmatprep.subr.bf16.mxu0 0
    %290 = vmatpush1.bf16.xpose.msra.mxu0 0
    %291 = vmatprep.subr.bf16.mxu0 0
    %292 = vmatpush1.bf16.xpose.msra.mxu0 0
    %293 = vmatprep.subr.bf16.mxu0 0
    %294 = vmatpush1.bf16.xpose.msra.mxu0 0
    %295 = vmatprep.subr.bf16.mxu0 0
    %296 = vmatpush1.bf16.xpose.msra.mxu0 0
    %297 = vmatprep.subr.bf16.mxu0 0
    %298 = vmatpush1.bf16.xpose.msra.mxu0 0
    %299 = vmatprep.subr.bf16.mxu0 0
    %300 = vmatpush1.bf16.xpose.msra.mxu0 0
    %301 = vmatprep.subr.bf16.mxu0 0
    %302 = vmatpush1.bf16.xpose.msra.mxu0 0
    %303 = vmatprep.subr.bf16.mxu0 0
    %304 = vmatpush1.bf16.xpose.msra.mxu0 0
    %305 = vmatprep.subr.bf16.mxu0 0
    %306 = vmatpush1.bf16.xpose.msra.mxu0 0
    %307 = vmatprep.subr.bf16.mxu0 0
    %308 = vmatpush1.bf16.xpose.msra.mxu0 0
    %309 = vmatprep.subr.bf16.mxu0 0
    %310 = vmatpush1.bf16.xpose.msra.mxu0 0
    %311 = vmatprep.subr.bf16.mxu0 0
    %312 = vmatpush1.bf16.xpose.msra.mxu0 0
    %313 = vmatprep.subr.bf16.mxu0 0
    %314 = vmatpush1.bf16.xpose.msra.mxu0 0
    %315 = vmatprep.subr.bf16.mxu0 0
    %316 = vmatpush1.bf16.xpose.msra.mxu0 0
    %317 = vmatprep.mubr.bf16.mxu0 0
    %318 = vmatmul.mubr.bf16.gmra.mrb[0].mxu0 %v280
    %v319 = vpop.f32.mrb[0].mxu0
    %v320 = vadd.f32 %v258, %v319
    %v321 = vpop.f32.mrb[0].mxu0
    %v322 = vpop.f32.mrb[0].mxu0
    %v323 = vpop.f32.mrb[0].mxu0
    %324 = vdwg.mxu0
    %vm325 = vcmask 64512
    %v326 = vsel %vm325, %v320, -inf
    %327 = vmax.xlane.f32.xlu0 %v326
    %v328 = vpop.xlane.xlu0 %327
    %v329 = vsub.f32 %v320, %v328
    %v330 = vmul.f32 %v329, 1.442695
    %v331 = vpow.pop %v330
    %v332 = vsel %vm325, %v331, 0.0
    %333 = vadd.xlane.f32.xlu0 %v332
    %v334 = vpop.xlane.xlu0 %333
    %v335 = vrcp.pop %v334
    %v336 = vmul.f32 %v331, %v335
    %v337 = vpack.c.bf16 %v336, %v336
    %v339 = vsel %vm325, %v337, 0
    %vm341 = vcmask 1043456
    %v343 = vsel %vm341, %v278, 0
    %345 = vmatprep.subr.bf16.mxu0 0
    %346 = vmatpush1.bf16.msra.mxu0 %v343
    %347 = vmatprep.subr.bf16.mxu0 0
    %348 = vmatpush1.bf16.msra.mxu0 0
    %349 = vmatprep.subr.bf16.mxu0 0
    %350 = vmatpush1.bf16.msra.mxu0 0
    %351 = vmatprep.subr.bf16.mxu0 0
    %352 = vmatpush1.bf16.msra.mxu0 0
    %353 = vmatprep.subr.bf16.mxu0 0
    %354 = vmatpush1.bf16.msra.mxu0 0
    %355 = vmatprep.subr.bf16.mxu0 0
    %356 = vmatpush1.bf16.msra.mxu0 0
    %357 = vmatprep.subr.bf16.mxu0 0
    %358 = vmatpush1.bf16.msra.mxu0 0
    %359 = vmatprep.subr.bf16.mxu0 0
    %360 = vmatpush1.bf16.msra.mxu0 0
    %361 = vmatprep.subr.bf16.mxu0 0
    %362 = vmatpush1.bf16.msra.mxu0 0
    %363 = vmatprep.subr.bf16.mxu0 0
    %364 = vmatpush1.bf16.msra.mxu0 0
    %365 = vmatprep.subr.bf16.mxu0 0
    %366 = vmatpush1.bf16.msra.mxu0 0
    %367 = vmatprep.subr.bf16.mxu0 0
    %368 = vmatpush1.bf16.msra.mxu0 0
    %369 = vmatprep.subr.bf16.mxu0 0
    %370 = vmatpush1.bf16.msra.mxu0 0
    %371 = vmatprep.subr.bf16.mxu0 0
    %372 = vmatpush1.bf16.msra.mxu0 0
    %373 = vmatprep.subr.bf16.mxu0 0
    %374 = vmatpush1.bf16.msra.mxu0 0
    %375 = vmatprep.subr.bf16.mxu0 0
    %376 = vmatpush1.bf16.msra.mxu0 0
    %377 = vmatprep.mubr.bf16.mxu0 0
    %378 = vmatmul.mubr.bf16.gmra.mrb[0].mxu0 %v339
    %v379 = vpop.f32.mrb[0].mxu0
    %v380 = vadd.f32 0.0, %v379
    %v381 = vpop.f32.mrb[0].mxu0
    %v382 = vpop.f32.mrb[0].mxu0
    %v383 = vpop.f32.mrb[0].mxu0
    %384 = vdwg.mxu0
    %v385 = vpack.c.bf16 %v380, %v380
    %387 = vrot.lane.b32.xlu0 %v276, 96
    %v388 = vpop.permute.xlu0 %387
    %390 = vrot.lane.b32.xlu0 %v277, 96
    %v391 = vpop.permute.xlu0 %390
    %v393 = vsel %vm93, %v388, 0
    %v396 = vsel %vm93, %v391, 0
    %398 = vmatprep.subr.bf16.mxu0 0
    %399 = vmatpush1.bf16.xpose.msra.mxu0 %v396
    %400 = vmatprep.subr.bf16.mxu0 0
    %401 = vmatpush1.bf16.xpose.msra.mxu0 0
    %402 = vmatprep.subr.bf16.mxu0 0
    %403 = vmatpush1.bf16.xpose.msra.mxu0 0
    %404 = vmatprep.subr.bf16.mxu0 0
    %405 = vmatpush1.bf16.xpose.msra.mxu0 0
    %406 = vmatprep.subr.bf16.mxu0 0
    %407 = vmatpush1.bf16.xpose.msra.mxu0 0
    %408 = vmatprep.subr.bf16.mxu0 0
    %409 = vmatpush1.bf16.xpose.msra.mxu0 0
    %410 = vmatprep.subr.bf16.mxu0 0
    %411 = vmatpush1.bf16.xpose.msra.mxu0 0
    %412 = vmatprep.subr.bf16.mxu0 0
    %413 = vmatpush1.bf16.xpose.msra.mxu0 0
    %414 = vmatprep.subr.bf16.mxu0 0
    %415 = vmatpush1.bf16.xpose.msra.mxu0 0
    %416 = vmatprep.subr.bf16.mxu0 0
    %417 = vmatpush1.bf16.xpose.msra.mxu0 0
    %418 = vmatprep.subr.bf16.mxu0 0
    %419 = vmatpush1.bf16.xpose.msra.mxu0 0
    %420 = vmatprep.subr.bf16.mxu0 0
    %421 = vmatpush1.bf16.xpose.msra.mxu0 0
    %422 = vmatprep.subr.bf16.mxu0 0
    %423 = vmatpush1.bf16.xpose.msra.mxu0 0
    %424 = vmatprep.subr.bf16.mxu0 0
    %425 = vmatpush1.bf16.xpose.msra.mxu0 0
    %426 = vmatprep.subr.bf16.mxu0 0
    %427 = vmatpush1.bf16.xpose.msra.mxu0 0
    %428 = vmatprep.subr.bf16.mxu0 0
    %429 = vmatpush1.bf16.xpose.msra.mxu0 0
    %430 = vmatprep.mubr.bf16.mxu0 0
    %431 = vmatmul.mubr.bf16.gmra.mrb[0].mxu0 %v393
    %v432 = vpop.f32.mrb[0].mxu0
    %v433 = vadd.f32 %v258, %v432
    %v434 = vpop.f32.mrb[0].mxu0
    %v435 = vpop.f32.mrb[0].mxu0
    %v436 = vpop.f32.mrb[0].mxu0
    %437 = vdwg.mxu0
    %v438 = vsel %vm325, %v433, -inf
    %439 = vmax.xlane.f32.xlu0 %v438
    %v440 = vpop.xlane.xlu0 %439
    %v441 = vsub.f32 %v433, %v440
    %v442 = vmul.f32 %v441, 1.442695
    %v443 = vpow.pop %v442
    %v444 = vsel %vm325, %v443, 0.0
    %445 = vadd.xlane.f32.xlu0 %v444
    %v446 = vpop.xlane.xlu0 %445
    %v447 = vrcp.pop %v446
    %v448 = vmul.f32 %v443, %v447
    %v449 = vpack.c.bf16 %v448, %v448
    %451 = vrot.lane.b32.xlu0 %v278, 96
    %v452 = vpop.permute.xlu0 %451
    %v454 = vsel %vm325, %v449, 0
    %v457 = vsel %vm341, %v452, 0
    %459 = vmatprep.subr.bf16.mxu0 0
    %460 = vmatpush1.bf16.msra.mxu0 %v457
    %461 = vmatprep.subr.bf16.mxu0 0
    %462 = vmatpush1.bf16.msra.mxu0 0
    %463 = vmatprep.subr.bf16.mxu0 0
    %464 = vmatpush1.bf16.msra.mxu0 0
    %465 = vmatprep.subr.bf16.mxu0 0
    %466 = vmatpush1.bf16.msra.mxu0 0
    %467 = vmatprep.subr.bf16.mxu0 0
    %468 = vmatpush1.bf16.msra.mxu0 0
    %469 = vmatprep.subr.bf16.mxu0 0
    %470 = vmatpush1.bf16.msra.mxu0 0
    %471 = vmatprep.subr.bf16.mxu0 0
    %472 = vmatpush1.bf16.msra.mxu0 0
    %473 = vmatprep.subr.bf16.mxu0 0
    %474 = vmatpush1.bf16.msra.mxu0 0
    %475 = vmatprep.subr.bf16.mxu0 0
    %476 = vmatpush1.bf16.msra.mxu0 0
    %477 = vmatprep.subr.bf16.mxu0 0
    %478 = vmatpush1.bf16.msra.mxu0 0
    %479 = vmatprep.subr.bf16.mxu0 0
    %480 = vmatpush1.bf16.msra.mxu0 0
    %481 = vmatprep.subr.bf16.mxu0 0
    %482 = vmatpush1.bf16.msra.mxu0 0
    %483 = vmatprep.subr.bf16.mxu0 0
    %484 = vmatpush1.bf16.msra.mxu0 0
    %485 = vmatprep.subr.bf16.mxu0 0
    %486 = vmatpush1.bf16.msra.mxu0 0
    %487 = vmatprep.subr.bf16.mxu0 0
    %488 = vmatpush1.bf16.msra.mxu0 0
    %489 = vmatprep.subr.bf16.mxu0 0
    %490 = vmatpush1.bf16.msra.mxu0 0
    %491 = vmatprep.mubr.bf16.mxu0 0
    %492 = vmatmul.mubr.bf16.gmra.mrb[0].mxu0 %v454
    %v493 = vpop.f32.mrb[0].mxu0
    %v494 = vadd.f32 0.0, %v493
    %v495 = vpop.f32.mrb[0].mxu0
    %v496 = vpop.f32.mrb[0].mxu0
    %v497 = vpop.f32.mrb[0].mxu0
    %498 = vdwg.mxu0
    %v499 = vpack.c.bf16 %v494, %v494
    %v504 = vunpack.c.l.b16 %v264
    %v505 = vunpack.c.l.b16 %v265
    %v506 = vunpack.c.l.b16 %v266
    %v507 = vunpack.c.l.b16 %v267
    %v508 = vpack.c.b16 %v505, %v504
    %v509 = vpack.c.b16 %v507, %v506
    %v513 = vsel %vm93, %v499, 0
    %515 = vmatprep.subr.bf16.mxu0 0
    %516 = vmatpush1.bf16.msra.mxu0 %v508
    %517 = vmatprep.subr.bf16.mxu0 0
    %518 = vmatpush1.bf16.msra.mxu0 %v509
    %519 = vmatprep.subr.bf16.mxu0 0
    %520 = vmatpush1.bf16.msra.mxu0 0
    %521 = vmatprep.subr.bf16.mxu0 0
    %522 = vmatpush1.bf16.msra.mxu0 0
    %523 = vmatprep.subr.bf16.mxu0 0
    %524 = vmatpush1.bf16.msra.mxu0 0
    %525 = vmatprep.subr.bf16.mxu0 0
    %526 = vmatpush1.bf16.msra.mxu0 0
    %527 = vmatprep.subr.bf16.mxu0 0
    %528 = vmatpush1.bf16.msra.mxu0 0
    %529 = vmatprep.subr.bf16.mxu0 0
    %530 = vmatpush1.bf16.msra.mxu0 0
    %531 = vmatprep.subr.bf16.mxu0 0
    %532 = vmatpush1.bf16.msra.mxu0 0
    %533 = vmatprep.subr.bf16.mxu0 0
    %534 = vmatpush1.bf16.msra.mxu0 0
    %535 = vmatprep.subr.bf16.mxu0 0
    %536 = vmatpush1.bf16.msra.mxu0 0
    %537 = vmatprep.subr.bf16.mxu0 0
    %538 = vmatpush1.bf16.msra.mxu0 0
    %539 = vmatprep.subr.bf16.mxu0 0
    %540 = vmatpush1.bf16.msra.mxu0 0
    %541 = vmatprep.subr.bf16.mxu0 0
    %542 = vmatpush1.bf16.msra.mxu0 0
    %543 = vmatprep.subr.bf16.mxu0 0
    %544 = vmatpush1.bf16.msra.mxu0 0
    %545 = vmatprep.subr.bf16.mxu0 0
    %546 = vmatpush1.bf16.msra.mxu0 0
    %547 = vmatprep.mubr.bf16.mxu0 0
    %548 = vmatmul.mubr.bf16.gmra.mrb[0].mxu0 %v513
    %v549 = vpop.f32.mrb[0].mxu0
    %v550 = vadd.f32 0.0, %v549
    %v551 = vpop.f32.mrb[0].mxu0
    %v552 = vpop.f32.mrb[0].mxu0
    %v553 = vpop.f32.mrb[0].mxu0
    %554 = vdwg.mxu0
    %v559 = vunpack.c.l.b16 %v260
    %v560 = vunpack.c.l.b16 %v261
    %v561 = vunpack.c.l.b16 %v262
    %v562 = vunpack.c.l.b16 %v263
    %v563 = vpack.c.b16 %v560, %v559
    %v564 = vpack.c.b16 %v562, %v561
    %v568 = vsel %vm93, %v385, 0
    %570 = vmatprep.subr.bf16.mxu0 0
    %571 = vmatpush1.bf16.msra.mxu0 %v563
    %572 = vmatprep.subr.bf16.mxu0 0
    %573 = vmatpush1.bf16.msra.mxu0 %v564
    %574 = vmatprep.subr.bf16.mxu0 0
    %575 = vmatpush1.bf16.msra.mxu0 0
    %576 = vmatprep.subr.bf16.mxu0 0
    %577 = vmatpush1.bf16.msra.mxu0 0
    %578 = vmatprep.subr.bf16.mxu0 0
    %579 = vmatpush1.bf16.msra.mxu0 0
    %580 = vmatprep.subr.bf16.mxu0 0
    %581 = vmatpush1.bf16.msra.mxu0 0
    %582 = vmatprep.subr.bf16.mxu0 0
    %583 = vmatpush1.bf16.msra.mxu0 0
    %584 = vmatprep.subr.bf16.mxu0 0
    %585 = vmatpush1.bf16.msra.mxu0 0
    %586 = vmatprep.subr.bf16.mxu0 0
    %587 = vmatpush1.bf16.msra.mxu0 0
    %588 = vmatprep.subr.bf16.mxu0 0
    %589 = vmatpush1.bf16.msra.mxu0 0
    %590 = vmatprep.subr.bf16.mxu0 0
    %591 = vmatpush1.bf16.msra.mxu0 0
    %592 = vmatprep.subr.bf16.mxu0 0
    %593 = vmatpush1.bf16.msra.mxu0 0
    %594 = vmatprep.subr.bf16.mxu0 0
    %595 = vmatpush1.bf16.msra.mxu0 0
    %596 = vmatprep.subr.bf16.mxu0 0
    %597 = vmatpush1.bf16.msra.mxu0 0
    %598 = vmatprep.subr.bf16.mxu0 0
    %599 = vmatpush1.bf16.msra.mxu0 0
    %600 = vmatprep.subr.bf16.mxu0 0
    %601 = vmatpush1.bf16.msra.mxu0 0
    %602 = vmatprep.mubr.bf16.mxu0 0
    %603 = vmatmul.mubr.bf16.gmra.mrb[0].mxu0 %v568
    %v604 = vpop.f32.mrb[0].mxu0
    %v605 = vadd.f32 %v550, %v604
    %v606 = vpop.f32.mrb[0].mxu0
    %v607 = vpop.f32.mrb[0].mxu0
    %v608 = vpop.f32.mrb[0].mxu0
    %609 = vdwg.mxu0
    %610 = vrot.lane.b32.xlu0 %v276, 64
    %v611 = vpop.permute.xlu0 %610
    %612 = vrot.lane.b32.xlu0 %v277, 64
    %v613 = vpop.permute.xlu0 %612
    %v615 = vsel %vm93, %v611, 0
    %v618 = vsel %vm93, %v613, 0
    %620 = vmatprep.subr.bf16.mxu0 0
    %621 = vmatpush1.bf16.xpose.msra.mxu0 %v618
    %622 = vmatprep.subr.bf16.mxu0 0
    %623 = vmatpush1.bf16.xpose.msra.mxu0 0
    %624 = vmatprep.subr.bf16.mxu0 0
    %625 = vmatpush1.bf16.xpose.msra.mxu0 0
    %626 = vmatprep.subr.bf16.mxu0 0
    %627 = vmatpush1.bf16.xpose.msra.mxu0 0
    %628 = vmatprep.subr.bf16.mxu0 0
    %629 = vmatpush1.bf16.xpose.msra.mxu0 0
    %630 = vmatprep.subr.bf16.mxu0 0
    %631 = vmatpush1.bf16.xpose.msra.mxu0 0
    %632 = vmatprep.subr.bf16.mxu0 0
    %633 = vmatpush1.bf16.xpose.msra.mxu0 0
    %634 = vmatprep.subr.bf16.mxu0 0
    %635 = vmatpush1.bf16.xpose.msra.mxu0 0
    %636 = vmatprep.subr.bf16.mxu0 0
    %637 = vmatpush1.bf16.xpose.msra.mxu0 0
    %638 = vmatprep.subr.bf16.mxu0 0
    %639 = vmatpush1.bf16.xpose.msra.mxu0 0
    %640 = vmatprep.subr.bf16.mxu0 0
    %641 = vmatpush1.bf16.xpose.msra.mxu0 0
    %642 = vmatprep.subr.bf16.mxu0 0
    %643 = vmatpush1.bf16.xpose.msra.mxu0 0
    %644 = vmatprep.subr.bf16.mxu0 0
    %645 = vmatpush1.bf16.xpose.msra.mxu0 0
    %646 = vmatprep.subr.bf16.mxu0 0
    %647 = vmatpush1.bf16.xpose.msra.mxu0 0
    %648 = vmatprep.subr.bf16.mxu0 0
    %649 = vmatpush1.bf16.xpose.msra.mxu0 0
    %650 = vmatprep.subr.bf16.mxu0 0
    %651 = vmatpush1.bf16.xpose.msra.mxu0 0
    %652 = vmatprep.mubr.bf16.mxu0 0
    %653 = vmatmul.mubr.bf16.gmra.mrb[0].mxu0 %v615
    %v654 = vpop.f32.mrb[0].mxu0
    %v655 = vadd.f32 %v258, %v654
    %v656 = vpop.f32.mrb[0].mxu0
    %v657 = vpop.f32.mrb[0].mxu0
    %v658 = vpop.f32.mrb[0].mxu0
    %659 = vdwg.mxu0
    %v660 = vsel %vm325, %v655, -inf
    %661 = vmax.xlane.f32.xlu0 %v660
    %v662 = vpop.xlane.xlu0 %661
    %v663 = vsub.f32 %v655, %v662
    %v664 = vmul.f32 %v663, 1.442695
    %v665 = vpow.pop %v664
    %v666 = vsel %vm325, %v665, 0.0
    %667 = vadd.xlane.f32.xlu0 %v666
    %v668 = vpop.xlane.xlu0 %667
    %v669 = vrcp.pop %v668
    %v670 = vmul.f32 %v665, %v669
    %v671 = vpack.c.bf16 %v670, %v670
    %672 = vrot.lane.b32.xlu0 %v278, 64
    %v673 = vpop.permute.xlu0 %672
    %v675 = vsel %vm325, %v671, 0
    %v678 = vsel %vm341, %v673, 0
    %680 = vmatprep.subr.bf16.mxu0 0
    %681 = vmatpush1.bf16.msra.mxu0 %v678
    %682 = vmatprep.subr.bf16.mxu0 0
    %683 = vmatpush1.bf16.msra.mxu0 0
    %684 = vmatprep.subr.bf16.mxu0 0
    %685 = vmatpush1.bf16.msra.mxu0 0
    %686 = vmatprep.subr.bf16.mxu0 0
    %687 = vmatpush1.bf16.msra.mxu0 0
    %688 = vmatprep.subr.bf16.mxu0 0
    %689 = vmatpush1.bf16.msra.mxu0 0
    %690 = vmatprep.subr.bf16.mxu0 0
    %691 = vmatpush1.bf16.msra.mxu0 0
    %692 = vmatprep.subr.bf16.mxu0 0
    %693 = vmatpush1.bf16.msra.mxu0 0
    %694 = vmatprep.subr.bf16.mxu0 0
    %695 = vmatpush1.bf16.msra.mxu0 0
    %696 = vmatprep.subr.bf16.mxu0 0
    %697 = vmatpush1.bf16.msra.mxu0 0
    %698 = vmatprep.subr.bf16.mxu0 0
    %699 = vmatpush1.bf16.msra.mxu0 0
    %700 = vmatprep.subr.bf16.mxu0 0
    %701 = vmatpush1.bf16.msra.mxu0 0
    %702 = vmatprep.subr.bf16.mxu0 0
    %703 = vmatpush1.bf16.msra.mxu0 0
    %704 = vmatprep.subr.bf16.mxu0 0
    %705 = vmatpush1.bf16.msra.mxu0 0
    %706 = vmatprep.subr.bf16.mxu0 0
    %707 = vmatpush1.bf16.msra.mxu0 0
    %708 = vmatprep.subr.bf16.mxu0 0
    %709 = vmatpush1.bf16.msra.mxu0 0
    %710 = vmatprep.subr.bf16.mxu0 0
    %711 = vmatpush1.bf16.msra.mxu0 0
    %712 = vmatprep.mubr.bf16.mxu0 0
    %713 = vmatmul.mubr.bf16.gmra.mrb[0].mxu0 %v675
    %v714 = vpop.f32.mrb[0].mxu0
    %v715 = vadd.f32 0.0, %v714
    %v716 = vpop.f32.mrb[0].mxu0
    %v717 = vpop.f32.mrb[0].mxu0
    %v718 = vpop.f32.mrb[0].mxu0
    %719 = vdwg.mxu0
    %v720 = vpack.c.bf16 %v715, %v715
    %v725 = vunpack.c.l.b16 %v268
    %v726 = vunpack.c.l.b16 %v269
    %v727 = vunpack.c.l.b16 %v270
    %v728 = vunpack.c.l.b16 %v271
    %v729 = vpack.c.b16 %v726, %v725
    %v730 = vpack.c.b16 %v728, %v727
    %v734 = vsel %vm93, %v720, 0
    %736 = vmatprep.subr.bf16.mxu0 0
    %737 = vmatpush1.bf16.msra.mxu0 %v729
    %738 = vmatprep.subr.bf16.mxu0 0
    %739 = vmatpush1.bf16.msra.mxu0 %v730
    %740 = vmatprep.subr.bf16.mxu0 0
    %741 = vmatpush1.bf16.msra.mxu0 0
    %742 = vmatprep.subr.bf16.mxu0 0
    %743 = vmatpush1.bf16.msra.mxu0 0
    %744 = vmatprep.subr.bf16.mxu0 0
    %745 = vmatpush1.bf16.msra.mxu0 0
    %746 = vmatprep.subr.bf16.mxu0 0
    %747 = vmatpush1.bf16.msra.mxu0 0
    %748 = vmatprep.subr.bf16.mxu0 0
    %749 = vmatpush1.bf16.msra.mxu0 0
    %750 = vmatprep.subr.bf16.mxu0 0
    %751 = vmatpush1.bf16.msra.mxu0 0
    %752 = vmatprep.subr.bf16.mxu0 0
    %753 = vmatpush1.bf16.msra.mxu0 0
    %754 = vmatprep.subr.bf16.mxu0 0
    %755 = vmatpush1.bf16.msra.mxu0 0
    %756 = vmatprep.subr.bf16.mxu0 0
    %757 = vmatpush1.bf16.msra.mxu0 0
    %758 = vmatprep.subr.bf16.mxu0 0
    %759 = vmatpush1.bf16.msra.mxu0 0
    %760 = vmatprep.subr.bf16.mxu0 0
    %761 = vmatpush1.bf16.msra.mxu0 0
    %762 = vmatprep.subr.bf16.mxu0 0
    %763 = vmatpush1.bf16.msra.mxu0 0
    %764 = vmatprep.subr.bf16.mxu0 0
    %765 = vmatpush1.bf16.msra.mxu0 0
    %766 = vmatprep.subr.bf16.mxu0 0
    %767 = vmatpush1.bf16.msra.mxu0 0
    %768 = vmatprep.mubr.bf16.mxu0 0
    %769 = vmatmul.mubr.bf16.gmra.mrb[0].mxu0 %v734
    %v770 = vpop.f32.mrb[0].mxu0
    %v771 = vadd.f32 0.0, %v770
    %v772 = vpop.f32.mrb[0].mxu0
    %v773 = vpop.f32.mrb[0].mxu0
    %v774 = vpop.f32.mrb[0].mxu0
    %775 = vdwg.mxu0
    %v776 = vadd.f32 %v605, %v771
    %777 = vrot.lane.b32.xlu0 %v276, 32
    %v778 = vpop.permute.xlu0 %777
    %779 = vrot.lane.b32.xlu0 %v277, 32
    %v780 = vpop.permute.xlu0 %779
    %v782 = vsel %vm93, %v778, 0
    %v785 = vsel %vm93, %v780, 0
    %787 = vmatprep.subr.bf16.mxu0 0
    %788 = vmatpush1.bf16.xpose.msra.mxu0 %v785
    %789 = vmatprep.subr.bf16.mxu0 0
    %790 = vmatpush1.bf16.xpose.msra.mxu0 0
    %791 = vmatprep.subr.bf16.mxu0 0
    %792 = vmatpush1.bf16.xpose.msra.mxu0 0
    %793 = vmatprep.subr.bf16.mxu0 0
    %794 = vmatpush1.bf16.xpose.msra.mxu0 0
    %795 = vmatprep.subr.bf16.mxu0 0
    %796 = vmatpush1.bf16.xpose.msra.mxu0 0
    %797 = vmatprep.subr.bf16.mxu0 0
    %798 = vmatpush1.bf16.xpose.msra.mxu0 0
    %799 = vmatprep.subr.bf16.mxu0 0
    %800 = vmatpush1.bf16.xpose.msra.mxu0 0
    %801 = vmatprep.subr.bf16.mxu0 0
    %802 = vmatpush1.bf16.xpose.msra.mxu0 0
    %803 = vmatprep.subr.bf16.mxu0 0
    %804 = vmatpush1.bf16.xpose.msra.mxu0 0
    %805 = vmatprep.subr.bf16.mxu0 0
    %806 = vmatpush1.bf16.xpose.msra.mxu0 0
    %807 = vmatprep.subr.bf16.mxu0 0
    %808 = vmatpush1.bf16.xpose.msra.mxu0 0
    %809 = vmatprep.subr.bf16.mxu0 0
    %810 = vmatpush1.bf16.xpose.msra.mxu0 0
    %811 = vmatprep.subr.bf16.mxu0 0
    %812 = vmatpush1.bf16.xpose.msra.mxu0 0
    %813 = vmatprep.subr.bf16.mxu0 0
    %814 = vmatpush1.bf16.xpose.msra.mxu0 0
    %815 = vmatprep.subr.bf16.mxu0 0
    %816 = vmatpush1.bf16.xpose.msra.mxu0 0
    %817 = vmatprep.subr.bf16.mxu0 0
    %818 = vmatpush1.bf16.xpose.msra.mxu0 0
    %819 = vmatprep.mubr.bf16.mxu0 0
    %820 = vmatmul.mubr.bf16.gmra.mrb[0].mxu0 %v782
    %v821 = vpop.f32.mrb[0].mxu0
    %v822 = vadd.f32 %v258, %v821
    %v823 = vpop.f32.mrb[0].mxu0
    %v824 = vpop.f32.mrb[0].mxu0
    %v825 = vpop.f32.mrb[0].mxu0
    %826 = vdwg.mxu0
    %v827 = vsel %vm325, %v822, -inf
    %828 = vmax.xlane.f32.xlu0 %v827
    %v829 = vpop.xlane.xlu0 %828
    %v830 = vsub.f32 %v822, %v829
    %v831 = vmul.f32 %v830, 1.442695
    %v832 = vpow.pop %v831
    %v833 = vsel %vm325, %v832, 0.0
    %834 = vadd.xlane.f32.xlu0 %v833
    %v835 = vpop.xlane.xlu0 %834
    %v836 = vrcp.pop %v835
    %v837 = vmul.f32 %v832, %v836
    %v838 = vpack.c.bf16 %v837, %v837
    %839 = vrot.lane.b32.xlu0 %v278, 32
    %v840 = vpop.permute.xlu0 %839
    %v842 = vsel %vm325, %v838, 0
    %v845 = vsel %vm341, %v840, 0
    %847 = vmatprep.subr.bf16.mxu0 0
    %848 = vmatpush1.bf16.msra.mxu0 %v845
    %849 = vmatprep.subr.bf16.mxu0 0
    %850 = vmatpush1.bf16.msra.mxu0 0
    %851 = vmatprep.subr.bf16.mxu0 0
    %852 = vmatpush1.bf16.msra.mxu0 0
    %853 = vmatprep.subr.bf16.mxu0 0
    %854 = vmatpush1.bf16.msra.mxu0 0
    %855 = vmatprep.subr.bf16.mxu0 0
    %856 = vmatpush1.bf16.msra.mxu0 0
    %857 = vmatprep.subr.bf16.mxu0 0
    %858 = vmatpush1.bf16.msra.mxu0 0
    %859 = vmatprep.subr.bf16.mxu0 0
    %860 = vmatpush1.bf16.msra.mxu0 0
    %861 = vmatprep.subr.bf16.mxu0 0
    %862 = vmatpush1.bf16.msra.mxu0 0
    %863 = vmatprep.subr.bf16.mxu0 0
    %864 = vmatpush1.bf16.msra.mxu0 0
    %865 = vmatprep.subr.bf16.mxu0 0
    %866 = vmatpush1.bf16.msra.mxu0 0
    %867 = vmatprep.subr.bf16.mxu0 0
    %868 = vmatpush1.bf16.msra.mxu0 0
    %869 = vmatprep.subr.bf16.mxu0 0
    %870 = vmatpush1.bf16.msra.mxu0 0
    %871 = vmatprep.subr.bf16.mxu0 0
    %872 = vmatpush1.bf16.msra.mxu0 0
    %873 = vmatprep.subr.bf16.mxu0 0
    %874 = vmatpush1.bf16.msra.mxu0 0
    %875 = vmatprep.subr.bf16.mxu0 0
    %876 = vmatpush1.bf16.msra.mxu0 0
    %877 = vmatprep.subr.bf16.mxu0 0
    %878 = vmatpush1.bf16.msra.mxu0 0
    %879 = vmatprep.mubr.bf16.mxu0 0
    %880 = vmatmul.mubr.bf16.gmra.mrb[0].mxu0 %v842
    %v881 = vpop.f32.mrb[0].mxu0
    %v882 = vadd.f32 0.0, %v881
    %v883 = vpop.f32.mrb[0].mxu0
    %v884 = vpop.f32.mrb[0].mxu0
    %v885 = vpop.f32.mrb[0].mxu0
    %886 = vdwg.mxu0
    %v887 = vpack.c.bf16 %v882, %v882
    %v892 = vunpack.c.l.b16 %v272
    %v893 = vunpack.c.l.b16 %v273
    %v894 = vunpack.c.l.b16 %v274
    %v895 = vunpack.c.l.b16 %v275
    %v896 = vpack.c.b16 %v893, %v892
    %v897 = vpack.c.b16 %v895, %v894
    %v901 = vsel %vm93, %v887, 0
    %903 = vmatprep.subr.bf16.mxu0 0
    %904 = vmatpush1.bf16.msra.mxu0 %v896
    %905 = vmatprep.subr.bf16.mxu0 0
    %906 = vmatpush1.bf16.msra.mxu0 %v897
    %907 = vmatprep.subr.bf16.mxu0 0
    %908 = vmatpush1.bf16.msra.mxu0 0
    %909 = vmatprep.subr.bf16.mxu0 0
    %910 = vmatpush1.bf16.msra.mxu0 0
    %911 = vmatprep.subr.bf16.mxu0 0
    %912 = vmatpush1.bf16.msra.mxu0 0
    %913 = vmatprep.subr.bf16.mxu0 0
    %914 = vmatpush1.bf16.msra.mxu0 0
    %915 = vmatprep.subr.bf16.mxu0 0
    %916 = vmatpush1.bf16.msra.mxu0 0
    %917 = vmatprep.subr.bf16.mxu0 0
    %918 = vmatpush1.bf16.msra.mxu0 0
    %919 = vmatprep.subr.bf16.mxu0 0
    %920 = vmatpush1.bf16.msra.mxu0 0
    %921 = vmatprep.subr.bf16.mxu0 0
    %922 = vmatpush1.bf16.msra.mxu0 0
    %923 = vmatprep.subr.bf16.mxu0 0
    %924 = vmatpush1.bf16.msra.mxu0 0
    %925 = vmatprep.subr.bf16.mxu0 0
    %926 = vmatpush1.bf16.msra.mxu0 0
    %927 = vmatprep.subr.bf16.mxu0 0
    %928 = vmatpush1.bf16.msra.mxu0 0
    %929 = vmatprep.subr.bf16.mxu0 0
    %930 = vmatpush1.bf16.msra.mxu0 0
    %931 = vmatprep.subr.bf16.mxu0 0
    %932 = vmatpush1.bf16.msra.mxu0 0
    %933 = vmatprep.subr.bf16.mxu0 0
    %934 = vmatpush1.bf16.msra.mxu0 0
    %935 = vmatprep.mubr.bf16.mxu0 0
    %936 = vmatmul.mubr.bf16.gmra.mrb[0].mxu0 %v901
    %v937 = vpop.f32.mrb[0].mxu0
    %v938 = vadd.f32 0.0, %v937
    %v939 = vpop.f32.mrb[0].mxu0
    %v940 = vpop.f32.mrb[0].mxu0
    %v941 = vpop.f32.mrb[0].mxu0
    %942 = vdwg.mxu0
    %v943 = vadd.f32 %v776, %v938
    %944 = vst.msk [vmem:[#allocation2] sm:$0xff] %vm93, %v943
    %v945 = vpack.c.bf16 %v135, %v135
    %v946 = vpack.c.bf16 %v191, %v191
    %v947 = vpack.c.bf16 %v247, %v247
    %v949 = vsel %vm93, %v945, 0
    %v952 = vsel %vm93, %v946, 0
    %954 = vmatprep.subr.bf16.mxu0 0
    %955 = vmatpush1.bf16.xpose.msra.mxu0 %v952
    %956 = vmatprep.subr.bf16.mxu0 0
    %957 = vmatpush1.bf16.xpose.msra.mxu0 0
    %958 = vmatprep.subr.bf16.mxu0 0
    %959 = vmatpush1.bf16.xpose.msra.mxu0 0
    %960 = vmatprep.subr.bf16.mxu0 0
    %961 = vmatpush1.bf16.xpose.msra.mxu0 0
    %962 = vmatprep.subr.bf16.mxu0 0
    %963 = vmatpush1.bf16.xpose.msra.mxu0 0
    %964 = vmatprep.subr.bf16.mxu0 0
    %965 = vmatpush1.bf16.xpose.msra.mxu0 0
    %966 = vmatprep.subr.bf16.mxu0 0
    %967 = vmatpush1.bf16.xpose.msra.mxu0 0
    %968 = vmatprep.subr.bf16.mxu0 0
    %969 = vmatpush1.bf16.xpose.msra.mxu0 0
    %970 = vmatprep.subr.bf16.mxu0 0
    %971 = vmatpush1.bf16.xpose.msra.mxu0 0
    %972 = vmatprep.subr.bf16.mxu0 0
    %973 = vmatpush1.bf16.xpose.msra.mxu0 0
    %974 = vmatprep.subr.bf16.mxu0 0
    %975 = vmatpush1.bf16.xpose.msra.mxu0 0
    %976 = vmatprep.subr.bf16.mxu0 0
    %977 = vmatpush1.bf16.xpose.msra.mxu0 0
    %978 = vmatprep.subr.bf16.mxu0 0
    %979 = vmatpush1.bf16.xpose.msra.mxu0 0
    %980 = vmatprep.subr.bf16.mxu0 0
    %981 = vmatpush1.bf16.xpose.msra.mxu0 0
    %982 = vmatprep.subr.bf16.mxu0 0
    %983 = vmatpush1.bf16.xpose.msra.mxu0 0
    %984 = vmatprep.subr.bf16.mxu0 0
    %985 = vmatpush1.bf16.xpose.msra.mxu0 0
    %986 = vmatprep.mubr.bf16.mxu0 0
    %987 = vmatmul.mubr.bf16.gmra.mrb[0].mxu0 %v949
    %v988 = vpop.f32.mrb[0].mxu0
    %v989 = vadd.f32 %v259, %v988
    %v990 = vpop.f32.mrb[0].mxu0
    %v991 = vpop.f32.mrb[0].mxu0
    %v992 = vpop.f32.mrb[0].mxu0
    %993 = vdwg.mxu0
    %v994 = vsel %vm325, %v989, -inf
    %995 = vmax.xlane.f32.xlu0 %v994
    %v996 = vpop.xlane.xlu0 %995
    %v997 = vsub.f32 %v989, %v996
    %v998 = vmul.f32 %v997, 1.442695
    %v999 = vpow.pop %v998
    %v1000 = vsel %vm325, %v999, 0.0
    %1001 = vadd.xlane.f32.xlu0 %v1000
    %v1002 = vpop.xlane.xlu0 %1001
    %v1003 = vrcp.pop %v1002
    %v1004 = vmul.f32 %v999, %v1003
    %v1005 = vpack.c.bf16 %v1004, %v1004
    %v1007 = vsel %vm325, %v1005, 0
    %v1010 = vsel %vm341, %v947, 0
    %1012 = vmatprep.subr.bf16.mxu0 0
    %1013 = vmatpush1.bf16.msra.mxu0 %v1010
    %1014 = vmatprep.subr.bf16.mxu0 0
    %1015 = vmatpush1.bf16.msra.mxu0 0
    %1016 = vmatprep.subr.bf16.mxu0 0
    %1017 = vmatpush1.bf16.msra.mxu0 0
    %1018 = vmatprep.subr.bf16.mxu0 0
    %1019 = vmatpush1.bf16.msra.mxu0 0
    %1020 = vmatprep.subr.bf16.mxu0 0
    %1021 = vmatpush1.bf16.msra.mxu0 0
    %1022 = vmatprep.subr.bf16.mxu0 0
    %1023 = vmatpush1.bf16.msra.mxu0 0
    %1024 = vmatprep.subr.bf16.mxu0 0
    %1025 = vmatpush1.bf16.msra.mxu0 0
    %1026 = vmatprep.subr.bf16.mxu0 0
    %1027 = vmatpush1.bf16.msra.mxu0 0
    %1028 = vmatprep.subr.bf16.mxu0 0
    %1029 = vmatpush1.bf16.msra.mxu0 0
    %1030 = vmatprep.subr.bf16.mxu0 0
    %1031 = vmatpush1.bf16.msra.mxu0 0
    %1032 = vmatprep.subr.bf16.mxu0 0
    %1033 = vmatpush1.bf16.msra.mxu0 0
    %1034 = vmatprep.subr.bf16.mxu0 0
    %1035 = vmatpush1.bf16.msra.mxu0 0
    %1036 = vmatprep.subr.bf16.mxu0 0
    %1037 = vmatpush1.bf16.msra.mxu0 0
    %1038 = vmatprep.subr.bf16.mxu0 0
    %1039 = vmatpush1.bf16.msra.mxu0 0
    %1040 = vmatprep.subr.bf16.mxu0 0
    %1041 = vmatpush1.bf16.msra.mxu0 0
    %1042 = vmatprep.subr.bf16.mxu0 0
    %1043 = vmatpush1.bf16.msra.mxu0 0
    %1044 = vmatprep.mubr.bf16.mxu0 0
    %1045 = vmatmul.mubr.bf16.gmra.mrb[0].mxu0 %v1007
    %v1046 = vpop.f32.mrb[0].mxu0
    %v1047 = vadd.f32 0.0, %v1046
    %v1048 = vpop.f32.mrb[0].mxu0
    %v1049 = vpop.f32.mrb[0].mxu0
    %v1050 = vpop.f32.mrb[0].mxu0
    %1051 = vdwg.mxu0
    %v1052 = vpack.c.bf16 %v1047, %v1047
    %1054 = vrot.lane.b32.xlu0 %v945, 96
    %v1055 = vpop.permute.xlu0 %1054
    %1057 = vrot.lane.b32.xlu0 %v946, 96
    %v1058 = vpop.permute.xlu0 %1057
    %v1060 = vsel %vm93, %v1055, 0
    %v1063 = vsel %vm93, %v1058, 0
    %1065 = vmatprep.subr.bf16.mxu0 0
    %1066 = vmatpush1.bf16.xpose.msra.mxu0 %v1063
    %1067 = vmatprep.subr.bf16.mxu0 0
    %1068 = vmatpush1.bf16.xpose.msra.mxu0 0
    %1069 = vmatprep.subr.bf16.mxu0 0
    %1070 = vmatpush1.bf16.xpose.msra.mxu0 0
    %1071 = vmatprep.subr.bf16.mxu0 0
    %1072 = vmatpush1.bf16.xpose.msra.mxu0 0
    %1073 = vmatprep.subr.bf16.mxu0 0
    %1074 = vmatpush1.bf16.xpose.msra.mxu0 0
    %1075 = vmatprep.subr.bf16.mxu0 0
    %1076 = vmatpush1.bf16.xpose.msra.mxu0 0
    %1077 = vmatprep.subr.bf16.mxu0 0
    %1078 = vmatpush1.bf16.xpose.msra.mxu0 0
    %1079 = vmatprep.subr.bf16.mxu0 0
    %1080 = vmatpush1.bf16.xpose.msra.mxu0 0
    %1081 = vmatprep.subr.bf16.mxu0 0
    %1082 = vmatpush1.bf16.xpose.msra.mxu0 0
    %1083 = vmatprep.subr.bf16.mxu0 0
    %1084 = vmatpush1.bf16.xpose.msra.mxu0 0
    %1085 = vmatprep.subr.bf16.mxu0 0
    %1086 = vmatpush1.bf16.xpose.msra.mxu0 0
    %1087 = vmatprep.subr.bf16.mxu0 0
    %1088 = vmatpush1.bf16.xpose.msra.mxu0 0
    %1089 = vmatprep.subr.bf16.mxu0 0
    %1090 = vmatpush1.bf16.xpose.msra.mxu0 0
    %1091 = vmatprep.subr.bf16.mxu0 0
    %1092 = vmatpush1.bf16.xpose.msra.mxu0 0
    %1093 = vmatprep.subr.bf16.mxu0 0
    %1094 = vmatpush1.bf16.xpose.msra.mxu0 0
    %1095 = vmatprep.subr.bf16.mxu0 0
    %1096 = vmatpush1.bf16.xpose.msra.mxu0 0
    %1097 = vmatprep.mubr.bf16.mxu0 0
    %1098 = vmatmul.mubr.bf16.gmra.mrb[0].mxu0 %v1060
    %v1099 = vpop.f32.mrb[0].mxu0
    %v1100 = vadd.f32 %v259, %v1099
    %v1101 = vpop.f32.mrb[0].mxu0
    %v1102 = vpop.f32.mrb[0].mxu0
    %v1103 = vpop.f32.mrb[0].mxu0
    %1104 = vdwg.mxu0
    %v1105 = vsel %vm325, %v1100, -inf
    %1106 = vmax.xlane.f32.xlu0 %v1105
    %v1107 = vpop.xlane.xlu0 %1106
    %v1108 = vsub.f32 %v1100, %v1107
    %v1109 = vmul.f32 %v1108, 1.442695
    %v1110 = vpow.pop %v1109
    %v1111 = vsel %vm325, %v1110, 0.0
    %1112 = vadd.xlane.f32.xlu0 %v1111
    %v1113 = vpop.xlane.xlu0 %1112
    %v1114 = vrcp.pop %v1113
    %v1115 = vmul.f32 %v1110, %v1114
    %v1116 = vpack.c.bf16 %v1115, %v1115
    %1118 = vrot.lane.b32.xlu0 %v947, 96
    %v1119 = vpop.permute.xlu0 %1118
    %v1121 = vsel %vm325, %v1116, 0
    %v1124 = vsel %vm341, %v1119, 0
    %1126 = vmatprep.subr.bf16.mxu0 0
    %1127 = vmatpush1.bf16.msra.mxu0 %v1124
    %1128 = vmatprep.subr.bf16.mxu0 0
    %1129 = vmatpush1.bf16.msra.mxu0 0
    %1130 = vmatprep.subr.bf16.mxu0 0
    %1131 = vmatpush1.bf16.msra.mxu0 0
    %1132 = vmatprep.subr.bf16.mxu0 0
    %1133 = vmatpush1.bf16.msra.mxu0 0
    %1134 = vmatprep.subr.bf16.mxu0 0
    %1135 = vmatpush1.bf16.msra.mxu0 0
    %1136 = vmatprep.subr.bf16.mxu0 0
    %1137 = vmatpush1.bf16.msra.mxu0 0
    %1138 = vmatprep.subr.bf16.mxu0 0
    %1139 = vmatpush1.bf16.msra.mxu0 0
    %1140 = vmatprep.subr.bf16.mxu0 0
    %1141 = vmatpush1.bf16.msra.mxu0 0
    %1142 = vmatprep.subr.bf16.mxu0 0
    %1143 = vmatpush1.bf16.msra.mxu0 0
    %1144 = vmatprep.subr.bf16.mxu0 0
    %1145 = vmatpush1.bf16.msra.mxu0 0
    %1146 = vmatprep.subr.bf16.mxu0 0
    %1147 = vmatpush1.bf16.msra.mxu0 0
    %1148 = vmatprep.subr.bf16.mxu0 0
    %1149 = vmatpush1.bf16.msra.mxu0 0
    %1150 = vmatprep.subr.bf16.mxu0 0
    %1151 = vmatpush1.bf16.msra.mxu0 0
    %1152 = vmatprep.subr.bf16.mxu0 0
    %1153 = vmatpush1.bf16.msra.mxu0 0
    %1154 = vmatprep.subr.bf16.mxu0 0
    %1155 = vmatpush1.bf16.msra.mxu0 0
    %1156 = vmatprep.subr.bf16.mxu0 0
    %1157 = vmatpush1.bf16.msra.mxu0 0
    %1158 = vmatprep.mubr.bf16.mxu0 0
    %1159 = vmatmul.mubr.bf16.gmra.mrb[0].mxu0 %v1121
    %v1160 = vpop.f32.mrb[0].mxu0
    %v1161 = vadd.f32 0.0, %v1160
    %v1162 = vpop.f32.mrb[0].mxu0
    %v1163 = vpop.f32.mrb[0].mxu0
    %v1164 = vpop.f32.mrb[0].mxu0
    %1165 = vdwg.mxu0
    %v1166 = vpack.c.bf16 %v1161, %v1161
    %v1168 = vsel %vm93, %v1166, 0
    %1170 = vmatprep.subr.bf16.mxu0 0
    %1171 = vmatpush1.bf16.msra.mxu0 %v508
    %1172 = vmatprep.subr.bf16.mxu0 0
    %1173 = vmatpush1.bf16.msra.mxu0 %v509
    %1174 = vmatprep.subr.bf16.mxu0 0
    %1175 = vmatpush1.bf16.msra.mxu0 0
    %1176 = vmatprep.subr.bf16.mxu0 0
    %1177 = vmatpush1.bf16.msra.mxu0 0
    %1178 = vmatprep.subr.bf16.mxu0 0
    %1179 = vmatpush1.bf16.msra.mxu0 0
    %1180 = vmatprep.subr.bf16.mxu0 0
    %1181 = vmatpush1.bf16.msra.mxu0 0
    %1182 = vmatprep.subr.bf16.mxu0 0
    %1183 = vmatpush1.bf16.msra.mxu0 0
    %1184 = vmatprep.subr.bf16.mxu0 0
    %1185 = vmatpush1.bf16.msra.mxu0 0
    %1186 = vmatprep.subr.bf16.mxu0 0
    %1187 = vmatpush1.bf16.msra.mxu0 0
    %1188 = vmatprep.subr.bf16.mxu0 0
    %1189 = vmatpush1.bf16.msra.mxu0 0
    %1190 = vmatprep.subr.bf16.mxu0 0
    %1191 = vmatpush1.bf16.msra.mxu0 0
    %1192 = vmatprep.subr.bf16.mxu0 0
    %1193 = vmatpush1.bf16.msra.mxu0 0
    %1194 = vmatprep.subr.bf16.mxu0 0
    %1195 = vmatpush1.bf16.msra.mxu0 0
    %1196 = vmatprep.subr.bf16.mxu0 0
    %1197 = vmatpush1.bf16.msra.mxu0 0
    %1198 = vmatprep.subr.bf16.mxu0 0
    %1199 = vmatpush1.bf16.msra.mxu0 0
    %1200 = vmatprep.subr.bf16.mxu0 0
    %1201 = vmatpush1.bf16.msra.mxu0 0
    %1202 = vmatprep.mubr.bf16.mxu0 0
    %1203 = vmatmul.mubr.bf16.gmra.mrb[0].mxu0 %v1168
    %v1204 = vpop.f32.mrb[0].mxu0
    %v1205 = vadd.f32 0.0, %v1204
    %v1206 = vpop.f32.mrb[0].mxu0
    %v1207 = vpop.f32.mrb[0].mxu0
    %v1208 = vpop.f32.mrb[0].mxu0
    %1209 = vdwg.mxu0
    %v1211 = vsel %vm93, %v1052, 0
    %1213 = vmatprep.subr.bf16.mxu0 0
    %1214 = vmatpush1.bf16.msra.mxu0 %v563
    %1215 = vmatprep.subr.bf16.mxu0 0
    %1216 = vmatpush1.bf16.msra.mxu0 %v564
    %1217 = vmatprep.subr.bf16.mxu0 0
    %1218 = vmatpush1.bf16.msra.mxu0 0
    %1219 = vmatprep.subr.bf16.mxu0 0
    %1220 = vmatpush1.bf16.msra.mxu0 0
    %1221 = vmatprep.subr.bf16.mxu0 0
    %1222 = vmatpush1.bf16.msra.mxu0 0
    %1223 = vmatprep.subr.bf16.mxu0 0
    %1224 = vmatpush1.bf16.msra.mxu0 0
    %1225 = vmatprep.subr.bf16.mxu0 0
    %1226 = vmatpush1.bf16.msra.mxu0 0
    %1227 = vmatprep.subr.bf16.mxu0 0
    %1228 = vmatpush1.bf16.msra.mxu0 0
    %1229 = vmatprep.subr.bf16.mxu0 0
    %1230 = vmatpush1.bf16.msra.mxu0 0
    %1231 = vmatprep.subr.bf16.mxu0 0
    %1232 = vmatpush1.bf16.msra.mxu0 0
    %1233 = vmatprep.subr.bf16.mxu0 0
    %1234 = vmatpush1.bf16.msra.mxu0 0
    %1235 = vmatprep.subr.bf16.mxu0 0
    %1236 = vmatpush1.bf16.msra.mxu0 0
    %1237 = vmatprep.subr.bf16.mxu0 0
    %1238 = vmatpush1.bf16.msra.mxu0 0
    %1239 = vmatprep.subr.bf16.mxu0 0
    %1240 = vmatpush1.bf16.msra.mxu0 0
    %1241 = vmatprep.subr.bf16.mxu0 0
    %1242 = vmatpush1.bf16.msra.mxu0 0
    %1243 = vmatprep.subr.bf16.mxu0 0
    %1244 = vmatpush1.bf16.msra.mxu0 0
    %1245 = vmatprep.mubr.bf16.mxu0 0
    %1246 = vmatmul.mubr.bf16.gmra.mrb[0].mxu0 %v1211
    %v1247 = vpop.f32.mrb[0].mxu0
    %v1248 = vadd.f32 %v1205, %v1247
    %v1249 = vpop.f32.mrb[0].mxu0
    %v1250 = vpop.f32.mrb[0].mxu0
    %v1251 = vpop.f32.mrb[0].mxu0
    %1252 = vdwg.mxu0
    %1253 = vrot.lane.b32.xlu0 %v945, 64
    %v1254 = vpop.permute.xlu0 %1253
    %1255 = vrot.lane.b32.xlu0 %v946, 64
    %v1256 = vpop.permute.xlu0 %1255
    %v1258 = vsel %vm93, %v1254, 0
    %v1261 = vsel %vm93, %v1256, 0
    %1263 = vmatprep.subr.bf16.mxu0 0
    %1264 = vmatpush1.bf16.xpose.msra.mxu0 %v1261
    %1265 = vmatprep.subr.bf16.mxu0 0
    %1266 = vmatpush1.bf16.xpose.msra.mxu0 0
    %1267 = vmatprep.subr.bf16.mxu0 0
    %1268 = vmatpush1.bf16.xpose.msra.mxu0 0
    %1269 = vmatprep.subr.bf16.mxu0 0
    %1270 = vmatpush1.bf16.xpose.msra.mxu0 0
    %1271 = vmatprep.subr.bf16.mxu0 0
    %1272 = vmatpush1.bf16.xpose.msra.mxu0 0
    %1273 = vmatprep.subr.bf16.mxu0 0
    %1274 = vmatpush1.bf16.xpose.msra.mxu0 0
    %1275 = vmatprep.subr.bf16.mxu0 0
    %1276 = vmatpush1.bf16.xpose.msra.mxu0 0
    %1277 = vmatprep.subr.bf16.mxu0 0
    %1278 = vmatpush1.bf16.xpose.msra.mxu0 0
    %1279 = vmatprep.subr.bf16.mxu0 0
    %1280 = vmatpush1.bf16.xpose.msra.mxu0 0
    %1281 = vmatprep.subr.bf16.mxu0 0
    %1282 = vmatpush1.bf16.xpose.msra.mxu0 0
    %1283 = vmatprep.subr.bf16.mxu0 0
    %1284 = vmatpush1.bf16.xpose.msra.mxu0 0
    %1285 = vmatprep.subr.bf16.mxu0 0
    %1286 = vmatpush1.bf16.xpose.msra.mxu0 0
    %1287 = vmatprep.subr.bf16.mxu0 0
    %1288 = vmatpush1.bf16.xpose.msra.mxu0 0
    %1289 = vmatprep.subr.bf16.mxu0 0
    %1290 = vmatpush1.bf16.xpose.msra.mxu0 0
    %1291 = vmatprep.subr.bf16.mxu0 0
    %1292 = vmatpush1.bf16.xpose.msra.mxu0 0
    %1293 = vmatprep.subr.bf16.mxu0 0
    %1294 = vmatpush1.bf16.xpose.msra.mxu0 0
    %1295 = vmatprep.mubr.bf16.mxu0 0
    %1296 = vmatmul.mubr.bf16.gmra.mrb[0].mxu0 %v1258
    %v1297 = vpop.f32.mrb[0].mxu0
    %v1298 = vadd.f32 %v259, %v1297
    %v1299 = vpop.f32.mrb[0].mxu0
    %v1300 = vpop.f32.mrb[0].mxu0
    %v1301 = vpop.f32.mrb[0].mxu0
    %1302 = vdwg.mxu0
    %v1303 = vsel %vm325, %v1298, -inf
    %1304 = vmax.xlane.f32.xlu0 %v1303
    %v1305 = vpop.xlane.xlu0 %1304
    %v1306 = vsub.f32 %v1298, %v1305
    %v1307 = vmul.f32 %v1306, 1.442695
    %v1308 = vpow.pop %v1307
    %v1309 = vsel %vm325, %v1308, 0.0
    %1310 = vadd.xlane.f32.xlu0 %v1309
    %v1311 = vpop.xlane.xlu0 %1310
    %v1312 = vrcp.pop %v1311
    %v1313 = vmul.f32 %v1308, %v1312
    %v1314 = vpack.c.bf16 %v1313, %v1313
    %1315 = vrot.lane.b32.xlu0 %v947, 64
    %v1316 = vpop.permute.xlu0 %1315
    %v1318 = vsel %vm325, %v1314, 0
    %v1321 = vsel %vm341, %v1316, 0
    %1323 = vmatprep.subr.bf16.mxu0 0
    %1324 = vmatpush1.bf16.msra.mxu0 %v1321
    %1325 = vmatprep.subr.bf16.mxu0 0
    %1326 = vmatpush1.bf16.msra.mxu0 0
    %1327 = vmatprep.subr.bf16.mxu0 0
    %1328 = vmatpush1.bf16.msra.mxu0 0
    %1329 = vmatprep.subr.bf16.mxu0 0
    %1330 = vmatpush1.bf16.msra.mxu0 0
    %1331 = vmatprep.subr.bf16.mxu0 0
    %1332 = vmatpush1.bf16.msra.mxu0 0
    %1333 = vmatprep.subr.bf16.mxu0 0
    %1334 = vmatpush1.bf16.msra.mxu0 0
    %1335 = vmatprep.subr.bf16.mxu0 0
    %1336 = vmatpush1.bf16.msra.mxu0 0
    %1337 = vmatprep.subr.bf16.mxu0 0
    %1338 = vmatpush1.bf16.msra.mxu0 0
    %1339 = vmatprep.subr.bf16.mxu0 0
    %1340 = vmatpush1.bf16.msra.mxu0 0
    %1341 = vmatprep.subr.bf16.mxu0 0
    %1342 = vmatpush1.bf16.msra.mxu0 0
    %1343 = vmatprep.subr.bf16.mxu0 0
    %1344 = vmatpush1.bf16.msra.mxu0 0
    %1345 = vmatprep.subr.bf16.mxu0 0
    %1346 = vmatpush1.bf16.msra.mxu0 0
    %1347 = vmatprep.subr.bf16.mxu0 0
    %1348 = vmatpush1.bf16.msra.mxu0 0
    %1349 = vmatprep.subr.bf16.mxu0 0
    %1350 = vmatpush1.bf16.msra.mxu0 0
    %1351 = vmatprep.subr.bf16.mxu0 0
    %1352 = vmatpush1.bf16.msra.mxu0 0
    %1353 = vmatprep.subr.bf16.mxu0 0
    %1354 = vmatpush1.bf16.msra.mxu0 0
    %1355 = vmatprep.mubr.bf16.mxu0 0
    %1356 = vmatmul.mubr.bf16.gmra.mrb[0].mxu0 %v1318
    %v1357 = vpop.f32.mrb[0].mxu0
    %v1358 = vadd.f32 0.0, %v1357
    %v1359 = vpop.f32.mrb[0].mxu0
    %v1360 = vpop.f32.mrb[0].mxu0
    %v1361 = vpop.f32.mrb[0].mxu0
    %1362 = vdwg.mxu0
    %v1363 = vpack.c.bf16 %v1358, %v1358
    %v1365 = vsel %vm93, %v1363, 0
    %1367 = vmatprep.subr.bf16.mxu0 0
    %1368 = vmatpush1.bf16.msra.mxu0 %v729
    %1369 = vmatprep.subr.bf16.mxu0 0
    %1370 = vmatpush1.bf16.msra.mxu0 %v730
    %1371 = vmatprep.subr.bf16.mxu0 0
    %1372 = vmatpush1.bf16.msra.mxu0 0
    %1373 = vmatprep.subr.bf16.mxu0 0
    %1374 = vmatpush1.bf16.msra.mxu0 0
    %1375 = vmatprep.subr.bf16.mxu0 0
    %1376 = vmatpush1.bf16.msra.mxu0 0
    %1377 = vmatprep.subr.bf16.mxu0 0
    %1378 = vmatpush1.bf16.msra.mxu0 0
    %1379 = vmatprep.subr.bf16.mxu0 0
    %1380 = vmatpush1.bf16.msra.mxu0 0
    %1381 = vmatprep.subr.bf16.mxu0 0
    %1382 = vmatpush1.bf16.msra.mxu0 0
    %1383 = vmatprep.subr.bf16.mxu0 0
    %1384 = vmatpush1.bf16.msra.mxu0 0
    %1385 = vmatprep.subr.bf16.mxu0 0
    %1386 = vmatpush1.bf16.msra.mxu0 0
    %1387 = vmatprep.subr.bf16.mxu0 0
    %1388 = vmatpush1.bf16.msra.mxu0 0
    %1389 = vmatprep.subr.bf16.mxu0 0
    %1390 = vmatpush1.bf16.msra.mxu0 0
    %1391 = vmatprep.subr.bf16.mxu0 0
    %1392 = vmatpush1.bf16.msra.mxu0 0
    %1393 = vmatprep.subr.bf16.mxu0 0
    %1394 = vmatpush1.bf16.msra.mxu0 0
    %1395 = vmatprep.subr.bf16.mxu0 0
    %1396 = vmatpush1.bf16.msra.mxu0 0
    %1397 = vmatprep.subr.bf16.mxu0 0
    %1398 = vmatpush1.bf16.msra.mxu0 0
    %1399 = vmatprep.mubr.bf16.mxu0 0
    %1400 = vmatmul.mubr.bf16.gmra.mrb[0].mxu0 %v1365
    %v1401 = vpop.f32.mrb[0].mxu0
    %v1402 = vadd.f32 0.0, %v1401
    %v1403 = vpop.f32.mrb[0].mxu0
    %v1404 = vpop.f32.mrb[0].mxu0
    %v1405 = vpop.f32.mrb[0].mxu0
    %1406 = vdwg.mxu0
    %v1407 = vadd.f32 %v1248, %v1402
    %1408 = vrot.lane.b32.xlu0 %v945, 32
    %v1409 = vpop.permute.xlu0 %1408
    %1410 = vrot.lane.b32.xlu0 %v946, 32
    %v1411 = vpop.permute.xlu0 %1410
    %v1413 = vsel %vm93, %v1409, 0
    %v1416 = vsel %vm93, %v1411, 0
    %1418 = vmatprep.subr.bf16.mxu0 0
    %1419 = vmatpush1.bf16.xpose.msra.mxu0 %v1416
    %1420 = vmatprep.subr.bf16.mxu0 0
    %1421 = vmatpush1.bf16.xpose.msra.mxu0 0
    %1422 = vmatprep.subr.bf16.mxu0 0
    %1423 = vmatpush1.bf16.xpose.msra.mxu0 0
    %1424 = vmatprep.subr.bf16.mxu0 0
    %1425 = vmatpush1.bf16.xpose.msra.mxu0 0
    %1426 = vmatprep.subr.bf16.mxu0 0
    %1427 = vmatpush1.bf16.xpose.msra.mxu0 0
    %1428 = vmatprep.subr.bf16.mxu0 0
    %1429 = vmatpush1.bf16.xpose.msra.mxu0 0
    %1430 = vmatprep.subr.bf16.mxu0 0
    %1431 = vmatpush1.bf16.xpose.msra.mxu0 0
    %1432 = vmatprep.subr.bf16.mxu0 0
    %1433 = vmatpush1.bf16.xpose.msra.mxu0 0
    %1434 = vmatprep.subr.bf16.mxu0 0
    %1435 = vmatpush1.bf16.xpose.msra.mxu0 0
    %1436 = vmatprep.subr.bf16.mxu0 0
    %1437 = vmatpush1.bf16.xpose.msra.mxu0 0
    %1438 = vmatprep.subr.bf16.mxu0 0
    %1439 = vmatpush1.bf16.xpose.msra.mxu0 0
    %1440 = vmatprep.subr.bf16.mxu0 0
    %1441 = vmatpush1.bf16.xpose.msra.mxu0 0
    %1442 = vmatprep.subr.bf16.mxu0 0
    %1443 = vmatpush1.bf16.xpose.msra.mxu0 0
    %1444 = vmatprep.subr.bf16.mxu0 0
    %1445 = vmatpush1.bf16.xpose.msra.mxu0 0
    %1446 = vmatprep.subr.bf16.mxu0 0
    %1447 = vmatpush1.bf16.xpose.msra.mxu0 0
    %1448 = vmatprep.subr.bf16.mxu0 0
    %1449 = vmatpush1.bf16.xpose.msra.mxu0 0
    %1450 = vmatprep.mubr.bf16.mxu0 0
    %1451 = vmatmul.mubr.bf16.gmra.mrb[0].mxu0 %v1413
    %v1452 = vpop.f32.mrb[0].mxu0
    %v1453 = vadd.f32 %v259, %v1452
    %v1454 = vpop.f32.mrb[0].mxu0
    %v1455 = vpop.f32.mrb[0].mxu0
    %v1456 = vpop.f32.mrb[0].mxu0
    %1457 = vdwg.mxu0
    %v1458 = vsel %vm325, %v1453, -inf
    %1459 = vmax.xlane.f32.xlu0 %v1458
    %v1460 = vpop.xlane.xlu0 %1459
    %v1461 = vsub.f32 %v1453, %v1460
    %v1462 = vmul.f32 %v1461, 1.442695
    %v1463 = vpow.pop %v1462
    %v1464 = vsel %vm325, %v1463, 0.0
    %1465 = vadd.xlane.f32.xlu0 %v1464
    %v1466 = vpop.xlane.xlu0 %1465
    %v1467 = vrcp.pop %v1466
    %v1468 = vmul.f32 %v1463, %v1467
    %v1469 = vpack.c.bf16 %v1468, %v1468
    %1470 = vrot.lane.b32.xlu0 %v947, 32
    %v1471 = vpop.permute.xlu0 %1470
    %v1473 = vsel %vm325, %v1469, 0
    %v1476 = vsel %vm341, %v1471, 0
    %1478 = vmatprep.subr.bf16.mxu0 0
    %1479 = vmatpush1.bf16.msra.mxu0 %v1476
    %1480 = vmatprep.subr.bf16.mxu0 0
    %1481 = vmatpush1.bf16.msra.mxu0 0
    %1482 = vmatprep.subr.bf16.mxu0 0
    %1483 = vmatpush1.bf16.msra.mxu0 0
    %1484 = vmatprep.subr.bf16.mxu0 0
    %1485 = vmatpush1.bf16.msra.mxu0 0
    %1486 = vmatprep.subr.bf16.mxu0 0
    %1487 = vmatpush1.bf16.msra.mxu0 0
    %1488 = vmatprep.subr.bf16.mxu0 0
    %1489 = vmatpush1.bf16.msra.mxu0 0
    %1490 = vmatprep.subr.bf16.mxu0 0
    %1491 = vmatpush1.bf16.msra.mxu0 0
    %1492 = vmatprep.subr.bf16.mxu0 0
    %1493 = vmatpush1.bf16.msra.mxu0 0
    %1494 = vmatprep.subr.bf16.mxu0 0
    %1495 = vmatpush1.bf16.msra.mxu0 0
    %1496 = vmatprep.subr.bf16.mxu0 0
    %1497 = vmatpush1.bf16.msra.mxu0 0
    %1498 = vmatprep.subr.bf16.mxu0 0
    %1499 = vmatpush1.bf16.msra.mxu0 0
    %1500 = vmatprep.subr.bf16.mxu0 0
    %1501 = vmatpush1.bf16.msra.mxu0 0
    %1502 = vmatprep.subr.bf16.mxu0 0
    %1503 = vmatpush1.bf16.msra.mxu0 0
    %1504 = vmatprep.subr.bf16.mxu0 0
    %1505 = vmatpush1.bf16.msra.mxu0 0
    %1506 = vmatprep.subr.bf16.mxu0 0
    %1507 = vmatpush1.bf16.msra.mxu0 0
    %1508 = vmatprep.subr.bf16.mxu0 0
    %1509 = vmatpush1.bf16.msra.mxu0 0
    %1510 = vmatprep.mubr.bf16.mxu0 0
    %1511 = vmatmul.mubr.bf16.gmra.mrb[0].mxu0 %v1473
    %v1512 = vpop.f32.mrb[0].mxu0
    %v1513 = vadd.f32 0.0, %v1512
    %v1514 = vpop.f32.mrb[0].mxu0
    %v1515 = vpop.f32.mrb[0].mxu0
    %v1516 = vpop.f32.mrb[0].mxu0
    %1517 = vdwg.mxu0
    %v1518 = vpack.c.bf16 %v1513, %v1513
    %v1520 = vsel %vm93, %v1518, 0
    %1522 = vmatprep.subr.bf16.mxu0 0
    %1523 = vmatpush1.bf16.msra.mxu0 %v896
    %1524 = vmatprep.subr.bf16.mxu0 0
    %1525 = vmatpush1.bf16.msra.mxu0 %v897
    %1526 = vmatprep.subr.bf16.mxu0 0
    %1527 = vmatpush1.bf16.msra.mxu0 0
    %1528 = vmatprep.subr.bf16.mxu0 0
    %1529 = vmatpush1.bf16.msra.mxu0 0
    %1530 = vmatprep.subr.bf16.mxu0 0
    %1531 = vmatpush1.bf16.msra.mxu0 0
    %1532 = vmatprep.subr.bf16.mxu0 0
    %1533 = vmatpush1.bf16.msra.mxu0 0
    %1534 = vmatprep.subr.bf16.mxu0 0
    %1535 = vmatpush1.bf16.msra.mxu0 0
    %1536 = vmatprep.subr.bf16.mxu0 0
    %1537 = vmatpush1.bf16.msra.mxu0 0
    %1538 = vmatprep.subr.bf16.mxu0 0
    %1539 = vmatpush1.bf16.msra.mxu0 0
    %1540 = vmatprep.subr.bf16.mxu0 0
    %1541 = vmatpush1.bf16.msra.mxu0 0
    %1542 = vmatprep.subr.bf16.mxu0 0
    %1543 = vmatpush1.bf16.msra.mxu0 0
    %1544 = vmatprep.subr.bf16.mxu0 0
    %1545 = vmatpush1.bf16.msra.mxu0 0
    %1546 = vmatprep.subr.bf16.mxu0 0
    %1547 = vmatpush1.bf16.msra.mxu0 0
    %1548 = vmatprep.subr.bf16.mxu0 0
    %1549 = vmatpush1.bf16.msra.mxu0 0
    %1550 = vmatprep.subr.bf16.mxu0 0
    %1551 = vmatpush1.bf16.msra.mxu0 0
    %1552 = vmatprep.subr.bf16.mxu0 0
    %1553 = vmatpush1.bf16.msra.mxu0 0
    %1554 = vmatprep.mubr.bf16.mxu0 0
    %1555 = vmatmul.mubr.bf16.gmra.mrb[0].mxu0 %v1520
    %v1556 = vpop.f32.mrb[0].mxu0
    %v1557 = vadd.f32 0.0, %v1556
    %v1558 = vpop.f32.mrb[0].mxu0
    %v1559 = vpop.f32.mrb[0].mxu0
    %v1560 = vpop.f32.mrb[0].mxu0
    %1561 = vdwg.mxu0
    %v1562 = vadd.f32 %v1407, %v1557
    %1563 = vst.msk [vmem:[#allocation2 + $0x8] sm:$0xff] %vm93, %v1562
    %v1564 = vld [vmem:[#allocation2] sm:$0xff]
    %v1565 = vld [vmem:[#allocation2 + $0x8] sm:$0xff]
    %v1566 = vld [vmem:[%s8] sm:$0x1]
    %v1568 = vlaneseq
    %v1569 = vshrl.u32 %v1568, 7
    %v1570 = vsub.s32 0, %v1569
    %v1571 = vrot.slane %v1566, %v1570
    %v1573 = vadd.f32 %v1564, %v1571
    %v1574 = vadd.f32 %v1565, %v1571
    %v1575 = vadd.f32 %v1573, %v58
    %v1576 = vadd.f32 %v1574, %v59
    %v1577 = vld [vmem:[%s13] sm:$0x1]
    %v1578 = vld [vmem:[%s14] sm:$0x1]
    %v1579 = vsel %vm93, %v1575, 0.0
    %1580 = vadd.xlane.f32.xlu0 %v1579
    %v1581 = vpop.xlane.xlu0 %1580
    %v1582 = vsel %vm93, %v1576, 0.0
    %1583 = vadd.xlane.f32.xlu0 %v1582
    %v1584 = vpop.xlane.xlu0 %1583
    %v1585 = vrcp.pop 32.0
    %v1586 = vmul.f32 %v1581, %v1585
    %v1587 = vmul.f32 %v1584, %v1585
    %v1588 = vsub.f32 %v1575, %v1586
    %v1589 = vsub.f32 %v1576, %v1587
    %v1590 = vmul.f32 %v1588, %v1588
    %v1591 = vmul.f32 %v1589, %v1589
    %v1592 = vsel %vm93, %v1590, 0.0
    %1593 = vadd.xlane.f32.xlu0 %v1592
    %v1594 = vpop.xlane.xlu0 %1593
    %v1595 = vsel %vm93, %v1591, 0.0
    %1596 = vadd.xlane.f32.xlu0 %v1595
    %v1597 = vpop.xlane.xlu0 %1596
    %v1598 = vmul.f32 %v1594, %v1585
    %v1599 = vmul.f32 %v1597, %v1585
    %v1600 = vadd.f32 %v1598, 1e-05
    %v1601 = vadd.f32 %v1599, 1e-05
    %v1602 = vrsqrt.pop %v1600
    %v1603 = vrsqrt.pop %v1601
    %v1604 = vmul.f32 %v1588, %v1602
    %v1605 = vmul.f32 %v1589, %v1603
    %v1607 = vlaneseq
    %v1608 = vshrl.u32 %v1607, 7
    %v1609 = vsub.s32 0, %v1608
    %v1610 = vrot.slane %v1577, %v1609
    %v1612 = vmul.f32 %v1604, %v1610
    %v1613 = vmul.f32 %v1605, %v1610
    %v1615 = vlaneseq
    %v1616 = vshrl.u32 %v1615, 7
    %v1617 = vsub.s32 0, %v1616
    %v1618 = vrot.slane %v1578, %v1617
    %v1620 = vadd.f32 %v1612, %v1618
    %v1621 = vadd.f32 %v1613, %v1618
    %v1622 = vpack.c.bf16 %v1621, %v1620
    %v1623 = vld [vmem:[%s9] sm:$0xf]
    %v1624 = vld [vmem:[%s9 + $0x4] sm:$0xf]
    %v1625 = vld [vmem:[%s9 + $0x8] sm:$0xf]
    %v1626 = vld [vmem:[%s9 + $0xc] sm:$0xf]
    %v1627 = vld [vmem:[%s10] sm:$0x1]
    %v1629 = vlaneseq
    %v1630 = vshrl.u32 %v1629, 7
    %v1631 = vsub.s32 0, %v1630
    %v1632 = vrot.slane %v1627, %v1631
    %v1638 = vunpack.c.l.b16 %v1623
    %v1639 = vunpack.c.l.b16 %v1624
    %v1640 = vunpack.c.l.b16 %v1625
    %v1641 = vunpack.c.l.b16 %v1626
    %v1642 = vpack.c.b16 %v1639, %v1638
    %v1643 = vpack.c.b16 %v1641, %v1640
    %v1647 = vsel %vm93, %v1622, 0
    %1649 = vmatprep.subr.bf16.mxu0 0
    %1650 = vmatpush1.bf16.msra.mxu0 %v1642
    %1651 = vmatprep.subr.bf16.mxu0 0
    %1652 = vmatpush1.bf16.msra.mxu0 %v1643
    %1653 = vmatprep.subr.bf16.mxu0 0
    %1654 = vmatpush1.bf16.msra.mxu0 0
    %1655 = vmatprep.subr.bf16.mxu0 0
    %1656 = vmatpush1.bf16.msra.mxu0 0
    %1657 = vmatprep.subr.bf16.mxu0 0
    %1658 = vmatpush1.bf16.msra.mxu0 0
    %1659 = vmatprep.subr.bf16.mxu0 0
    %1660 = vmatpush1.bf16.msra.mxu0 0
    %1661 = vmatprep.subr.bf16.mxu0 0
    %1662 = vmatpush1.bf16.msra.mxu0 0
    %1663 = vmatprep.subr.bf16.mxu0 0
    %1664 = vmatpush1.bf16.msra.mxu0 0
    %1665 = vmatprep.subr.bf16.mxu0 0
    %1666 = vmatpush1.bf16.msra.mxu0 0
    %1667 = vmatprep.subr.bf16.mxu0 0
    %1668 = vmatpush1.bf16.msra.mxu0 0
    %1669 = vmatprep.subr.bf16.mxu0 0
    %1670 = vmatpush1.bf16.msra.mxu0 0
    %1671 = vmatprep.subr.bf16.mxu0 0
    %1672 = vmatpush1.bf16.msra.mxu0 0
    %1673 = vmatprep.subr.bf16.mxu0 0
    %1674 = vmatpush1.bf16.msra.mxu0 0
    %1675 = vmatprep.subr.bf16.mxu0 0
    %1676 = vmatpush1.bf16.msra.mxu0 0
    %1677 = vmatprep.subr.bf16.mxu0 0
    %1678 = vmatpush1.bf16.msra.mxu0 0
    %1679 = vmatprep.subr.bf16.mxu0 0
    %1680 = vmatpush1.bf16.msra.mxu0 0
    %1681 = vmatprep.mubr.bf16.mxu0 0
    %1682 = vmatmul.mubr.bf16.gmra.mrb[0].mxu0 %v1647
    %v1683 = vpop.f32.mrb[0].mxu0
    %v1684 = vadd.f32 %v1632, %v1683
    %v1685 = vpop.f32.mrb[0].mxu0
    %v1686 = vpop.f32.mrb[0].mxu0
    %v1687 = vadd.f32 %v1632, %v1686
    %v1688 = vpop.f32.mrb[0].mxu0
    %1689 = vdwg.mxu0
    %v1690 = vmax.f32 %v1684, 0.0
    %v1691 = vmax.f32 %v1687, 0.0
    %v1692 = vpack.c.bf16 %v1691, %v1690
    %v1693 = vld [vmem:[%s11] sm:$0xf]
    %v1694 = vld [vmem:[%s11 + $0x4] sm:$0xf]
    %v1695 = vld [vmem:[%s11 + $0x8] sm:$0xf]
    %v1696 = vld [vmem:[%s11 + $0xc] sm:$0xf]
    %v1697 = vld [vmem:[%s11 + $0x10] sm:$0xf]
    %v1698 = vld [vmem:[%s11 + $0x14] sm:$0xf]
    %v1699 = vld [vmem:[%s11 + $0x18] sm:$0xf]
    %v1700 = vld [vmem:[%s11 + $0x1c] sm:$0xf]
    %v1701 = vld [vmem:[%s12] sm:$0x1]
    %v1703 = vlaneseq
    %v1704 = vshrl.u32 %v1703, 7
    %v1705 = vsub.s32 0, %v1704
    %v1706 = vrot.slane %v1701, %v1705
    %v1716 = vunpack.c.l.b16 %v1693
    %v1717 = vunpack.c.l.b16 %v1694
    %v1718 = vunpack.c.l.b16 %v1695
    %v1719 = vunpack.c.l.b16 %v1696
    %v1720 = vunpack.c.l.b16 %v1697
    %v1721 = vunpack.c.l.b16 %v1698
    %v1722 = vunpack.c.l.b16 %v1699
    %v1723 = vunpack.c.l.b16 %v1700
    %v1724 = vpack.c.b16 %v1717, %v1716
    %v1725 = vpack.c.b16 %v1719, %v1718
    %v1726 = vpack.c.b16 %v1721, %v1720
    %v1727 = vpack.c.b16 %v1723, %v1722
    %vm1732 = vcmask 523264
    %v1734 = vsel %vm1732, %v1692, 0
    %1736 = vmatprep.subr.bf16.mxu0 0
    %1737 = vmatpush1.bf16.msra.mxu0 %v1724
    %1738 = vmatprep.subr.bf16.mxu0 0
    %1739 = vmatpush1.bf16.msra.mxu0 %v1725
    %1740 = vmatprep.subr.bf16.mxu0 0
    %1741 = vmatpush1.bf16.msra.mxu0 %v1726
    %1742 = vmatprep.subr.bf16.mxu0 0
    %1743 = vmatpush1.bf16.msra.mxu0 %v1727
    %1744 = vmatprep.subr.bf16.mxu0 0
    %1745 = vmatpush1.bf16.msra.mxu0 0
    %1746 = vmatprep.subr.bf16.mxu0 0
    %1747 = vmatpush1.bf16.msra.mxu0 0
    %1748 = vmatprep.subr.bf16.mxu0 0
    %1749 = vmatpush1.bf16.msra.mxu0 0
    %1750 = vmatprep.subr.bf16.mxu0 0
    %1751 = vmatpush1.bf16.msra.mxu0 0
    %1752 = vmatprep.subr.bf16.mxu0 0
    %1753 = vmatpush1.bf16.msra.mxu0 0
    %1754 = vmatprep.subr.bf16.mxu0 0
    %1755 = vmatpush1.bf16.msra.mxu0 0
    %1756 = vmatprep.subr.bf16.mxu0 0
    %1757 = vmatpush1.bf16.msra.mxu0 0
    %1758 = vmatprep.subr.bf16.mxu0 0
    %1759 = vmatpush1.bf16.msra.mxu0 0
    %1760 = vmatprep.subr.bf16.mxu0 0
    %1761 = vmatpush1.bf16.msra.mxu0 0
    %1762 = vmatprep.subr.bf16.mxu0 0
    %1763 = vmatpush1.bf16.msra.mxu0 0
    %1764 = vmatprep.subr.bf16.mxu0 0
    %1765 = vmatpush1.bf16.msra.mxu0 0
    %1766 = vmatprep.subr.bf16.mxu0 0
    %1767 = vmatpush1.bf16.msra.mxu0 0
    %1768 = vmatprep.mubr.bf16.mxu0 0
    %1769 = vmatmul.mubr.bf16.gmra.mrb[0].mxu0 %v1734
    %v1770 = vpop.f32.mrb[0].mxu0
    %v1771 = vadd.f32 %v1706, %v1770
    %v1772 = vpop.f32.mrb[0].mxu0
    %v1773 = vpop.f32.mrb[0].mxu0
    %v1774 = vadd.f32 %v1706, %v1773
    %v1775 = vpop.f32.mrb[0].mxu0
    %1776 = vdwg.mxu0
    %v1777 = vadd.f32 %v1771, %v1620
    %v1778 = vadd.f32 %v1774, %v1621
    %v1779 = vld [vmem:[%s15] sm:$0x1]
    %v1780 = vld [vmem:[%s16] sm:$0x1]
    %v1781 = vsel %vm93, %v1777, 0.0
    %1782 = vadd.xlane.f32.xlu0 %v1781
    %v1783 = vpop.xlane.xlu0 %1782
    %v1784 = vsel %vm93, %v1778, 0.0
    %1785 = vadd.xlane.f32.xlu0 %v1784
    %v1786 = vpop.xlane.xlu0 %1785
    %v1787 = vmul.f32 %v1783, %v1585
    %v1788 = vmul.f32 %v1786, %v1585
    %v1789 = vsub.f32 %v1777, %v1787
    %v1790 = vsub.f32 %v1778, %v1788
    %v1791 = vmul.f32 %v1789, %v1789
    %v1792 = vmul.f32 %v1790, %v1790
    %v1793 = vsel %vm93, %v1791, 0.0
    %1794 = vadd.xlane.f32.xlu0 %v1793
    %v1795 = vpop.xlane.xlu0 %1794
    %v1796 = vsel %vm93, %v1792, 0.0
    %1797 = vadd.xlane.f32.xlu0 %v1796
    %v1798 = vpop.xlane.xlu0 %1797
    %v1799 = vmul.f32 %v1795, %v1585
    %v1800 = vmul.f32 %v1798, %v1585
    %v1801 = vadd.f32 %v1799, 1e-05
    %v1802 = vadd.f32 %v1800, 1e-05
    %v1803 = vrsqrt.pop %v1801
    %v1804 = vrsqrt.pop %v1802
    %v1805 = vmul.f32 %v1789, %v1803
    %v1806 = vmul.f32 %v1790, %v1804
    %v1808 = vlaneseq
    %v1809 = vshrl.u32 %v1808, 7
    %v1810 = vsub.s32 0, %v1809
    %v1811 = vrot.slane %v1779, %v1810
    %v1813 = vmul.f32 %v1805, %v1811
    %v1814 = vmul.f32 %v1806, %v1811
    %v1816 = vlaneseq
    %v1817 = vshrl.u32 %v1816, 7
    %v1818 = vsub.s32 0, %v1817
    %v1819 = vrot.slane %v1780, %v1818
    %v1821 = vadd.f32 %v1813, %v1819
    %v1822 = vadd.f32 %v1814, %v1819
    %1823 = vst.msk [vmem:[#allocation3] sm:$0xff] %vm93, %v1821
    %1824 = vst.msk [vmem:[#allocation3 + $0x8] sm:$0xff] %vm93, %v1822
    // Predicated region
    $region70: #{tpu_custom_call.1} parent=1 // pred_check
      _
    $region71: #{tpu_custom_call.1} parent=1 // pred_check_branch
      %1826 = sbr.rel (0) target = $region73
    $region72: #{tpu_custom_call.1} parent=1 // pred_region
      %s1828 = ssub.s32 256, 256
      %1829 = vsyncadd [#allocation4], %s1828
      %s1830 = sshll.u32 [#allocation3], 4
      %s1831 = int_to_ptr.vmem [resolvable:$true] %s1830
      %1836 = dma.vmem_to_hbm [thread:$0]  %s1831, 256, %s17, [#allocation4], 128, 128, 8
    $region73: #{tpu_custom_call.1} parent=1 // pred_fallthru
      _
    // Predicated region
    $region74: #{tpu_custom_call.1} parent=1 // pred_check
      _
    $region75: #{tpu_custom_call.1} parent=1 // pred_check_branch
      %1838 = sbr.rel (0) target = $region77
    $region76: #{tpu_custom_call.1} parent=1 // pred_region
      %1839 = dma.done [#allocation4], 256
    $region77: #{tpu_custom_call.1} parent=1 // pred_fallthru
      _
    %1840 = vsyncpa [#allocation4], 1

</llo_original>
